<compile_context>
chip_gen: v5e
topology: v5e:2x2
jax: 0.10.0
libtpu: 0.0.40
codegen_flags: <defaults>
</compile_context>

<pallas_src>
import functools

import jax
import jax.numpy as jnp
from jax.experimental import pallas as pl
from jax.experimental.pallas import tpu as pltpu


def _attention_kernel(qf_ref, kf_ref, vf_ref,
                      wq_ref, bq_ref, wk_ref, bk_ref, wv_ref, bv_ref,
                      out_ref, attn_ref, k_scr, v_scr, *, exp_dtype):
    bt, tq, dq = qf_ref.shape
    _, lk, dk = kf_ref.shape
    dv = vf_ref.shape[-1]
    d_out = wq_ref.shape[-1]

    # ---- K/V projection: once per batch block, reused by every q tile ----
    @pl.when(pl.program_id(1) == 0)
    def _():
        kf = kf_ref[...].reshape(bt * lk, dk)          # fold batch into MXU M
        vf = vf_ref[...].reshape(bt * lk, dv)
        k = jnp.dot(kf, wk_ref[...], preferred_element_type=jnp.float32) + bk_ref[...]
        v = jnp.dot(vf, wv_ref[...], preferred_element_type=jnp.float32) + bv_ref[...]
        k_scr[...] = k.reshape(bt, lk, d_out).astype(jnp.bfloat16)
        v_scr[...] = v.reshape(bt, lk, d_out).astype(jnp.bfloat16)

    # ---- Q projection (1/sqrt(d_out) pre-folded into Wq / bq) ----
    qf = qf_ref[...].reshape(bt * tq, dq)
    q = jnp.dot(qf, wq_ref[...], preferred_element_type=jnp.float32) + bq_ref[...]
    q = q.reshape(bt, tq, d_out).astype(jnp.bfloat16)

    # ---- Scaled dot-product attention (contract last dims; no k transpose) ----
    scores = jnp.einsum("bqd,bkd->bqk", q, k_scr[...],
                        preferred_element_type=jnp.float32)           # (bt,tq,lk)

    m = jnp.max(scores, axis=-1, keepdims=True)
    # bf16 exp on parts with a bf16 EUP (v6e/v7x); f32 on v5e and older.
    e = jnp.exp((scores - m).astype(exp_dtype)).astype(jnp.float32)
    denom = jnp.sum(e, axis=-1, keepdims=True)
    attn = e * pl.reciprocal(denom, approx=True)                      # (bt,tq,lk)

    out = jnp.einsum("bqk,bkd->bqd", attn.astype(jnp.bfloat16), v_scr[...],
                     preferred_element_type=jnp.float32)              # (bt,tq,d_out)

    out_ref[...] = out.astype(out_ref.dtype)
    attn_ref[...] = attn.astype(attn_ref.dtype)


def _device_config():
    """Return (vmem_capacity_bytes, has_bf16_eup) with conservative fallbacks."""
    kind = ""
    try:
        kind = jax.devices()[0].device_kind.lower()
    except Exception:
        pass
    vmem = None
    try:
        vmem = int(pltpu.get_tpu_info().vmem_capacity_bytes)
    except Exception:
        vmem = None
    if vmem is None:
        # 128 MiB on v5e/v6e parts, 64 MiB per-core assumption otherwise (v7x-safe).
        vmem = 128 * 1024 * 1024 if ("v5" in kind or "v6" in kind) else 64 * 1024 * 1024
    # bf16 EUP exists on v6e/v7x; not on v2-v5.
    bf16_eup = bool(kind) and not any(t in kind for t in ("v2", "v3", "v4", "v5"))
    return vmem, bf16_eup


def _default_tiles(B, Lq, vmem_cap):
    if vmem_cap >= 96 * 1024 * 1024:     # 128 MiB parts (v5e / v6e): bigger tiles
        bt, tq = 16, 256
    else:                                 # 64 MiB per-core parts (v7x)
        bt, tq = 8, 128
    return min(bt, B), min(tq, Lq)


def _vmem_limit_bytes(bt, tq, lk, dq, dk, dv, d_out, out_bytes, attn_bytes, vmem_cap):
    bf16, f32, db = 2, 4, 2   # db = worst-case double-buffering of pipeline blocks
    blk_in = (db * bf16 * (bt * tq * dq + bt * lk * (dk + dv) + (dq + dk + dv) * d_out)
              + db * f32 * 3 * d_out)
    blk_out = db * (bt * tq * d_out * out_bytes + bt * tq * lk * attn_bytes)
    scratch = bf16 * 2 * bt * lk * d_out
    tmp = f32 * (bt * tq * d_out + 2 * bt * lk * d_out + 3 * bt * tq * lk)
    est = blk_in + blk_out + scratch + 2 * tmp
    cap = (vmem_cap * 3) // 4            # ~48 MiB on v7x, ~96 MiB on v5e/v6e
    return int(min(max(est, 32 * 1024 * 1024), cap))


def my_attention(q_f, k_f, v_f, params, *, batch_block=None, q_block=None,
                 out_dtype=jnp.float32, attn_dtype=jnp.float32):
    """params: dict with wq/bq/wk/bk/wv/bv.

    wq: (dq, d_out) (already transposed vs. PyTorch's (d_out, dq)), bq: (1, d_out).
    Returns (out, attn): out (B, Lq, d_out), attn (B, Lq, Lk).
    """
    B, Lq, dq = q_f.shape
    _, Lk, dk = k_f.shape
    dv = v_f.shape[-1]
    d_out = params["wq"].shape[1]
    scale = 1.0 / float(d_out) ** 0.5    # ScaledDotProductAttention(d_out ** 0.5)

    vmem_cap, bf16_eup = _device_config()
    bt_d, tq_d = _default_tiles(B, Lq, vmem_cap)
    bt = min(batch_block, B) if batch_block else bt_d
    tq = min(q_block, Lq) if q_block else tq_d
    grid = (pl.cdiv(B, bt), pl.cdiv(Lq, tq))

    # bf16 MXU operands; f32 accumulation happens in-kernel.
    qf16 = q_f.astype(jnp.bfloat16)
    kf16 = k_f.astype(jnp.bfloat16)
    vf16 = v_f.astype(jnp.bfloat16)
    wq16 = (params["wq"] * scale).astype(jnp.bfloat16)   # scale folded into Wq/bq
    wk16 = params["wk"].astype(jnp.bfloat16)
    wv16 = params["wv"].astype(jnp.bfloat16)
    bq32 = (params["bq"] * scale).astype(jnp.float32)
    bk32 = params["bk"].astype(jnp.float32)
    bv32 = params["bv"].astype(jnp.float32)

    kernel = functools.partial(
        _attention_kernel,
        exp_dtype=jnp.bfloat16 if bf16_eup else jnp.float32)

    out_specs = [
        pl.BlockSpec((bt, tq, d_out), lambda b, qi: (b, qi, 0)),
        pl.BlockSpec((bt, tq, Lk), lambda b, qi: (b, qi, 0)),
    ]
    out_shape = [
        jax.ShapeDtypeStruct((B, Lq, d_out), out_dtype),
        jax.ShapeDtypeStruct((B, Lq, Lk), attn_dtype),
    ]
    scratch_shapes = [
        pltpu.VMEM((bt, Lk, d_out), jnp.bfloat16),   # projected K (resident)
        pltpu.VMEM((bt, Lk, d_out), jnp.bfloat16),   # projected V (resident)
    ]
    compiler_params = pltpu.CompilerParams(
        dimension_semantics=("parallel", "arbitrary"),   # qi must be serial (scratch reuse)
        vmem_limit_bytes=_vmem_limit_bytes(
            bt, tq, Lk, dq, dk, dv, d_out,
            jnp.dtype(out_dtype).itemsize, jnp.dtype(attn_dtype).itemsize,
            vmem_cap))

    def build_in_specs(single_buffer_resident):
        def resident(shape, imap):
            # Blocks whose index never changes along qi: single-buffer them.
            if single_buffer_resident:
                return pl.BlockSpec(shape, imap, pipeline_mode=pl.Buffered(1))
            return pl.BlockSpec(shape, imap)
        return [
            pl.BlockSpec((bt, tq, dq), lambda b, qi: (b, qi, 0)),
            resident((bt, Lk, dk), lambda b, qi: (b, 0, 0)),
            resident((bt, Lk, dv), lambda b, qi: (b, 0, 0)),
            resident((dq, d_out), lambda b, qi: (0, 0)),
            resident((1, d_out), lambda b, qi: (0, 0)),
            resident((dk, d_out), lambda b, qi: (0, 0)),
            resident((1, d_out), lambda b, qi: (0, 0)),
            resident((dv, d_out), lambda b, qi: (0, 0)),
            resident((1, d_out), lambda b, qi: (0, 0)),
        ]

    last_err = None
    for single_buffer in (True, False):   # fallback if pipeline_mode is unsupported
        try:
            return pl.pallas_call(
                kernel,
                grid=grid,
                in_specs=build_in_specs(single_buffer),
                out_specs=out_specs,
                out_shape=out_shape,
                scratch_shapes=scratch_shapes,
                compiler_params=compiler_params,
            )(qf16, kf16, vf16, wq16, bq32, wk16, bk32, wv16, bv32)
        except Exception as e:            # version-dependent Buffered(1) support
            last_err = e
    raise last_err


def _init_params(key, dq, dk, dv, d_out):
    """Deterministic synthetic init mimicking nn.Linear (uniform in +-1/sqrt(fan_in))."""
    ks = jax.random.split(key, 6)

    def lin(kw, kb, d_in):
        bound = 1.0 / (d_in ** 0.5)
        w = jax.random.uniform(kw, (d_in, d_out), jnp.float32, -bound, bound)
        b = jax.random.uniform(kb, (1, d_out), jnp.float32, -bound, bound)
        return w, b

    wq, bq = lin(ks[0], ks[1], dq)
    wk, bk = lin(ks[2], ks[3], dk)
    wv, bv = lin(ks[4], ks[5], dv)
    return {"wq": wq, "bq": bq, "wk": wk, "bk": bk, "wv": wv, "bv": bv}


def _reference(q_f, k_f, v_f, p):
    q = q_f @ p["wq"] + p["bq"][0]
    k = k_f @ p["wk"] + p["bk"][0]
    v = v_f @ p["wv"] + p["bv"][0]
    d_out = p["wq"].shape[1]
    scores = jnp.einsum("bqd,bkd->bqk", q / (d_out ** 0.5), k)
    attn = jax.nn.softmax(scores, axis=-1)
    out = jnp.einsum("bqk,bkd->bqd", attn, v)
    return out, attn


if __name__ == "__main__":
    B, Lq, Lk = 2, 8, 8
    dq, dk, dv, d_out = 16, 16, 16, 32

    key = jax.random.PRNGKey(0)
    k1, k2, k3, kp = jax.random.split(key, 4)
    q_f = jax.random.normal(k1, (B, Lq, dq), jnp.float32)
    k_f = jax.random.normal(k2, (B, Lk, dk), jnp.float32)
    v_f = jax.random.normal(k3, (B, Lk, dv), jnp.float32)
    params = _init_params(kp, dq, dk, dv, d_out)

    out, attn = my_attention(q_f, k_f, v_f, params)
    out = jax.block_until_ready(out)
    attn = jax.block_until_ready(attn)

    # Correctness check against a pure-fp32 JAX reference.  Tolerances are
    # loosened (vs. 1e-4) because the kernel intentionally uses bf16 MXU
    # operands, bf16 exp on v6e/v7x, and the approximate EUP reciprocal.
    out_ref, attn_ref = _reference(q_f, k_f, v_f, params)
    assert jnp.allclose(out, out_ref, atol=3e-2, rtol=3e-2)
    assert jnp.allclose(attn, attn_ref, atol=3e-2, rtol=3e-2)
    assert bool(jnp.all(jnp.isfinite(out))) and bool(jnp.all(jnp.isfinite(attn)))

    print("KERNEL_OK")
</pallas_src>

<mosaic_0001>
module attributes {stable_mosaic.version = 11 : i64} {
  func.func @_attention_kernel(%arg0: i32, %arg1: i32, %arg2: memref<2x8x16xbf16, #tpu.memory_space<vmem>>, %arg3: memref<2x8x16xbf16, #tpu.memory_space<vmem>>, %arg4: memref<2x8x16xbf16, #tpu.memory_space<vmem>>, %arg5: memref<16x32xbf16, #tpu.memory_space<vmem>>, %arg6: memref<1x32xf32, #tpu.memory_space<vmem>>, %arg7: memref<16x32xbf16, #tpu.memory_space<vmem>>, %arg8: memref<1x32xf32, #tpu.memory_space<vmem>>, %arg9: memref<16x32xbf16, #tpu.memory_space<vmem>>, %arg10: memref<1x32xf32, #tpu.memory_space<vmem>>, %arg11: memref<2x8x32xf32, #tpu.memory_space<vmem>>, %arg12: memref<2x8x8xf32, #tpu.memory_space<vmem>>, %arg13: memref<2x8x32xbf16, #tpu.memory_space<vmem>>, %arg14: memref<2x8x32xbf16, #tpu.memory_space<vmem>>) attributes {dimension_semantics = [#tpu.dimension_semantics<parallel>, #tpu.dimension_semantics<arbitrary>], iteration_bounds = array<i64: 1, 1>, scalar_prefetch = 0 : i64, scratch_operands = 2 : i64, tpu.core_type = #tpu.core_type<tc>, window_params = [{transform_indices = @transform_0, window_bounds = array<i64: 2, 8, 16>}, {pipeline_mode = #tpu.pipeline_mode<synchronous>, transform_indices = @transform_1, window_bounds = array<i64: 2, 8, 16>}, {pipeline_mode = #tpu.pipeline_mode<synchronous>, transform_indices = @transform_2, window_bounds = array<i64: 2, 8, 16>}, {pipeline_mode = #tpu.pipeline_mode<synchronous>, transform_indices = @transform_3, window_bounds = array<i64: 16, 32>}, {pipeline_mode = #tpu.pipeline_mode<synchronous>, transform_indices = @transform_4, window_bounds = array<i64: 1, 32>}, {pipeline_mode = #tpu.pipeline_mode<synchronous>, transform_indices = @transform_5, window_bounds = array<i64: 16, 32>}, {pipeline_mode = #tpu.pipeline_mode<synchronous>, transform_indices = @transform_6, window_bounds = array<i64: 1, 32>}, {pipeline_mode = #tpu.pipeline_mode<synchronous>, transform_indices = @transform_7, window_bounds = array<i64: 16, 32>}, {pipeline_mode = #tpu.pipeline_mode<synchronous>, transform_indices = @transform_8, window_bounds = array<i64: 1, 32>}, {transform_indices = @transform_9, window_bounds = array<i64: 2, 8, 32>}, {transform_indices = @transform_10, window_bounds = array<i64: 2, 8, 8>}]} {
    %c0_i32 = arith.constant 0 : i32
    %0 = arith.cmpi eq, %arg1, %c0_i32 : i32
    %1 = arith.extui %0 : i1 to i32
    %c0_i32_0 = arith.constant 0 : i32
    %2 = arith.cmpi ne, %1, %c0_i32_0 : i32
    scf.if %2 {
      %c0_23 = arith.constant 0 : index
      %c0_24 = arith.constant 0 : index
      %c0_25 = arith.constant 0 : index
      %31 = vector.load %arg3[%c0_23, %c0_24, %c0_25] : memref<2x8x16xbf16, #tpu.memory_space<vmem>>, vector<2x8x16xbf16>
      %32 = vector.shape_cast %31 : vector<2x8x16xbf16> to vector<16x16xbf16>
      %c0_26 = arith.constant 0 : index
      %c0_27 = arith.constant 0 : index
      %c0_28 = arith.constant 0 : index
      %33 = vector.load %arg4[%c0_26, %c0_27, %c0_28] : memref<2x8x16xbf16, #tpu.memory_space<vmem>>, vector<2x8x16xbf16>
      %34 = vector.shape_cast %33 : vector<2x8x16xbf16> to vector<16x16xbf16>
      %c0_29 = arith.constant 0 : index
      %c0_30 = arith.constant 0 : index
      %35 = vector.load %arg7[%c0_29, %c0_30] : memref<16x32xbf16, #tpu.memory_space<vmem>>, vector<16x32xbf16>
      %cst_31 = arith.constant dense<0.000000e+00> : vector<16x32xf32>
      %36 = tpu.matmul %32, %35, %cst_31 {dimension_numbers = #tpu.dot_dimension_numbers<[1], [0], [0], [1], [0, 0, 1, 1], [], []>} : vector<16x16xbf16>, vector<16x32xbf16>, vector<16x32xf32> -> vector<16x32xf32>
      %c0_32 = arith.constant 0 : index
      %c0_33 = arith.constant 0 : index
      %37 = vector.load %arg8[%c0_32, %c0_33] : memref<1x32xf32, #tpu.memory_space<vmem>>, vector<1x32xf32>
      %38 = vector.broadcast %37 : vector<1x32xf32> to vector<16x32xf32>
      %39 = arith.addf %36, %38 : vector<16x32xf32>
      %c0_34 = arith.constant 0 : index
      %c0_35 = arith.constant 0 : index
      %40 = vector.load %arg9[%c0_34, %c0_35] : memref<16x32xbf16, #tpu.memory_space<vmem>>, vector<16x32xbf16>
      %cst_36 = arith.constant dense<0.000000e+00> : vector<16x32xf32>
      %41 = tpu.matmul %34, %40, %cst_36 {dimension_numbers = #tpu.dot_dimension_numbers<[1], [0], [0], [1], [0, 0, 1, 1], [], []>} : vector<16x16xbf16>, vector<16x32xbf16>, vector<16x32xf32> -> vector<16x32xf32>
      %c0_37 = arith.constant 0 : index
      %c0_38 = arith.constant 0 : index
      %42 = vector.load %arg10[%c0_37, %c0_38] : memref<1x32xf32, #tpu.memory_space<vmem>>, vector<1x32xf32>
      %43 = vector.broadcast %42 : vector<1x32xf32> to vector<16x32xf32>
      %44 = arith.addf %41, %43 : vector<16x32xf32>
      %45 = vector.shape_cast %39 : vector<16x32xf32> to vector<2x8x32xf32>
      %46 = arith.truncf %45 : vector<2x8x32xf32> to vector<2x8x32xbf16>
      %c0_39 = arith.constant 0 : index
      %c0_40 = arith.constant 0 : index
      %c0_41 = arith.constant 0 : index
      %47 = vector.load %arg13[%c0_39, %c0_40, %c0_41] : memref<2x8x32xbf16, #tpu.memory_space<vmem>>, vector<2x8x32xbf16>
      tpu.vector_store %arg13[%c0_39, %c0_40, %c0_41], %46 {strides = array<i32>} : memref<2x8x32xbf16, #tpu.memory_space<vmem>>, vector<2x8x32xbf16>,
      %48 = vector.shape_cast %44 : vector<16x32xf32> to vector<2x8x32xf32>
      %49 = arith.truncf %48 : vector<2x8x32xf32> to vector<2x8x32xbf16>
      %c0_42 = arith.constant 0 : index
      %c0_43 = arith.constant 0 : index
      %c0_44 = arith.constant 0 : index
      %50 = vector.load %arg14[%c0_42, %c0_43, %c0_44] : memref<2x8x32xbf16, #tpu.memory_space<vmem>>, vector<2x8x32xbf16>
      tpu.vector_store %arg14[%c0_42, %c0_43, %c0_44], %49 {strides = array<i32>} : memref<2x8x32xbf16, #tpu.memory_space<vmem>>, vector<2x8x32xbf16>,
    } else {
    }
    %c0 = arith.constant 0 : index
    %c0_1 = arith.constant 0 : index
    %c0_2 = arith.constant 0 : index
    %3 = vector.load %arg2[%c0, %c0_1, %c0_2] : memref<2x8x16xbf16, #tpu.memory_space<vmem>>, vector<2x8x16xbf16>
    %4 = vector.shape_cast %3 : vector<2x8x16xbf16> to vector<16x16xbf16>
    %c0_3 = arith.constant 0 : index
    %c0_4 = arith.constant 0 : index
    %5 = vector.load %arg5[%c0_3, %c0_4] : memref<16x32xbf16, #tpu.memory_space<vmem>>, vector<16x32xbf16>
    %cst = arith.constant dense<0.000000e+00> : vector<16x32xf32>
    %6 = tpu.matmul %4, %5, %cst {dimension_numbers = #tpu.dot_dimension_numbers<[1], [0], [0], [1], [0, 0, 1, 1], [], []>} : vector<16x16xbf16>, vector<16x32xbf16>, vector<16x32xf32> -> vector<16x32xf32>
    %c0_5 = arith.constant 0 : index
    %c0_6 = arith.constant 0 : index
    %7 = vector.load %arg6[%c0_5, %c0_6] : memref<1x32xf32, #tpu.memory_space<vmem>>, vector<1x32xf32>
    %8 = vector.broadcast %7 : vector<1x32xf32> to vector<16x32xf32>
    %9 = arith.addf %6, %8 : vector<16x32xf32>
    %10 = vector.shape_cast %9 : vector<16x32xf32> to vector<2x8x32xf32>
    %11 = arith.truncf %10 : vector<2x8x32xf32> to vector<2x8x32xbf16>
    %c0_7 = arith.constant 0 : index
    %c0_8 = arith.constant 0 : index
    %c0_9 = arith.constant 0 : index
    %12 = vector.load %arg13[%c0_7, %c0_8, %c0_9] : memref<2x8x32xbf16, #tpu.memory_space<vmem>>, vector<2x8x32xbf16>
    "tpu.trace_start"() <{level = 10 : i32, message = "bqd,bkd->bqk"}> : () -> ()
    %cst_10 = arith.constant dense<0.000000e+00> : vector<2x8x8xf32>
    %13 = tpu.matmul %11, %12, %cst_10 {dimension_numbers = #tpu.dot_dimension_numbers<[2], [2], [1], [1], [0, 0, 0, 1, 1, 1], [0], [0]>} : vector<2x8x32xbf16>, vector<2x8x32xbf16>, vector<2x8x8xf32> -> vector<2x8x8xf32>
    "tpu.trace_stop"() : () -> ()
    %cst_11 = arith.constant dense<0xFF800000> : vector<2x8xf32>
    %14 = vector.multi_reduction <maximumf>, %13, %cst_11 [2] : vector<2x8x8xf32> to vector<2x8xf32>
    %15 = vector.shape_cast %14 : vector<2x8xf32> to vector<2x8x1xf32>
    %16 = vector.broadcast %15 : vector<2x8x1xf32> to vector<2x8x8xf32>
    %17 = arith.subf %13, %16 : vector<2x8x8xf32>
    %18 = arith.truncf %17 : vector<2x8x8xf32> to vector<2x8x8xbf16>
    %19 = math.exp %18 : vector<2x8x8xbf16>
    %20 = arith.extf %19 : vector<2x8x8xbf16> to vector<2x8x8xf32>
    %cst_12 = arith.constant dense<0.000000e+00> : vector<2x8xf32>
    %21 = vector.multi_reduction <add>, %20, %cst_12 [2] : vector<2x8x8xf32> to vector<2x8xf32>
    %22 = vector.shape_cast %21 : vector<2x8xf32> to vector<2x8x1xf32>
    %23 = tpu.reciprocal %22 {approx = true} : vector<2x8x1xf32> -> vector<2x8x1xf32>
    %24 = vector.broadcast %23 : vector<2x8x1xf32> to vector<2x8x8xf32>
    %25 = arith.mulf %20, %24 : vector<2x8x8xf32>
    %26 = arith.truncf %25 : vector<2x8x8xf32> to vector<2x8x8xbf16>
    %c0_13 = arith.constant 0 : index
    %c0_14 = arith.constant 0 : index
    %c0_15 = arith.constant 0 : index
    %27 = vector.load %arg14[%c0_13, %c0_14, %c0_15] : memref<2x8x32xbf16, #tpu.memory_space<vmem>>, vector<2x8x32xbf16>
    "tpu.trace_start"() <{level = 10 : i32, message = "bqk,bkd->bqd"}> : () -> ()
    %cst_16 = arith.constant dense<0.000000e+00> : vector<2x8x32xf32>
    %28 = tpu.matmul %26, %27, %cst_16 {dimension_numbers = #tpu.dot_dimension_numbers<[2], [1], [1], [2], [0, 0, 0, 1, 1, 2], [0], [0]>} : vector<2x8x8xbf16>, vector<2x8x32xbf16>, vector<2x8x32xf32> -> vector<2x8x32xf32>
    "tpu.trace_stop"() : () -> ()
    %c0_17 = arith.constant 0 : index
    %c0_18 = arith.constant 0 : index
    %c0_19 = arith.constant 0 : index
    %29 = vector.load %arg11[%c0_17, %c0_18, %c0_19] : memref<2x8x32xf32, #tpu.memory_space<vmem>>, vector<2x8x32xf32>
    tpu.vector_store %arg11[%c0_17, %c0_18, %c0_19], %28 {strides = array<i32>} : memref<2x8x32xf32, #tpu.memory_space<vmem>>, vector<2x8x32xf32>,
    %c0_20 = arith.constant 0 : index
    %c0_21 = arith.constant 0 : index
    %c0_22 = arith.constant 0 : index
    %30 = vector.load %arg12[%c0_20, %c0_21, %c0_22] : memref<2x8x8xf32, #tpu.memory_space<vmem>>, vector<2x8x8xf32>
    tpu.vector_store %arg12[%c0_20, %c0_21, %c0_22], %25 {strides = array<i32>} : memref<2x8x8xf32, #tpu.memory_space<vmem>>, vector<2x8x8xf32>,
    return
  }
  func.func @transform_0(%arg0: i32, %arg1: i32) -> (i32, i32, i32) {
    %c0_i32 = arith.constant 0 : i32
    %c0_i32_0 = arith.constant 0 : i32
    return %arg0, %arg1, %c0_i32 : i32, i32, i32
  }
  func.func @transform_1(%arg0: i32, %arg1: i32) -> (i32, i32, i32) {
    %c0_i32 = arith.constant 0 : i32
    %c0_i32_0 = arith.constant 0 : i32
    %c0_i32_1 = arith.constant 0 : i32
    return %arg0, %c0_i32, %c0_i32_0 : i32, i32, i32
  }
  func.func @transform_2(%arg0: i32, %arg1: i32) -> (i32, i32, i32) {
    %c0_i32 = arith.constant 0 : i32
    %c0_i32_0 = arith.constant 0 : i32
    %c0_i32_1 = arith.constant 0 : i32
    return %arg0, %c0_i32, %c0_i32_0 : i32, i32, i32
  }
  func.func @transform_3(%arg0: i32, %arg1: i32) -> (i32, i32) {
    %c0_i32 = arith.constant 0 : i32
    %c0_i32_0 = arith.constant 0 : i32
    %c0_i32_1 = arith.constant 0 : i32
    return %c0_i32, %c0_i32_0 : i32, i32
  }
  func.func @transform_4(%arg0: i32, %arg1: i32) -> (i32, i32) {
    %c0_i32 = arith.constant 0 : i32
    %c0_i32_0 = arith.constant 0 : i32
    %c0_i32_1 = arith.constant 0 : i32
    return %c0_i32, %c0_i32_0 : i32, i32
  }
  func.func @transform_5(%arg0: i32, %arg1: i32) -> (i32, i32) {
    %c0_i32 = arith.constant 0 : i32
    %c0_i32_0 = arith.constant 0 : i32
    %c0_i32_1 = arith.constant 0 : i32
    return %c0_i32, %c0_i32_0 : i32, i32
  }
  func.func @transform_6(%arg0: i32, %arg1: i32) -> (i32, i32) {
    %c0_i32 = arith.constant 0 : i32
    %c0_i32_0 = arith.constant 0 : i32
    %c0_i32_1 = arith.constant 0 : i32
    return %c0_i32, %c0_i32_0 : i32, i32
  }
  func.func @transform_7(%arg0: i32, %arg1: i32) -> (i32, i32) {
    %c0_i32 = arith.constant 0 : i32
    %c0_i32_0 = arith.constant 0 : i32
    %c0_i32_1 = arith.constant 0 : i32
    return %c0_i32, %c0_i32_0 : i32, i32
  }
  func.func @transform_8(%arg0: i32, %arg1: i32) -> (i32, i32) {
    %c0_i32 = arith.constant 0 : i32
    %c0_i32_0 = arith.constant 0 : i32
    %c0_i32_1 = arith.constant 0 : i32
    return %c0_i32, %c0_i32_0 : i32, i32
  }
  func.func @transform_9(%arg0: i32, %arg1: i32) -> (i32, i32, i32) {
    %c0_i32 = arith.constant 0 : i32
    %c0_i32_0 = arith.constant 0 : i32
    return %arg0, %arg1, %c0_i32 : i32, i32, i32
  }
  func.func @transform_10(%arg0: i32, %arg1: i32) -> (i32, i32, i32) {
    %c0_i32 = arith.constant 0 : i32
    %c0_i32_0 = arith.constant 0 : i32
    return %arg0, %arg1, %c0_i32 : i32, i32, i32
  }
}

module attributes {stable_mosaic.version = 11 : i64} {
  func.func @_attention_kernel(%arg0: i32, %arg1: i32, %arg2: memref<2x8x16xbf16, #tpu.memory_space<vmem>>, %arg3: memref<2x8x16xbf16, #tpu.memory_space<vmem>>, %arg4: memref<2x8x16xbf16, #tpu.memory_space<vmem>>, %arg5: memref<16x32xbf16, #tpu.memory_space<vmem>>, %arg6: memref<1x32xf32, #tpu.memory_space<vmem>>, %arg7: memref<16x32xbf16, #tpu.memory_space<vmem>>, %arg8: memref<1x32xf32, #tpu.memory_space<vmem>>, %arg9: memref<16x32xbf16, #tpu.memory_space<vmem>>, %arg10: memref<1x32xf32, #tpu.memory_space<vmem>>, %arg11: memref<2x8x32xf32, #tpu.memory_space<vmem>>, %arg12: memref<2x8x8xf32, #tpu.memory_space<vmem>>, %arg13: memref<2x8x32xbf16, #tpu.memory_space<vmem>>, %arg14: memref<2x8x32xbf16, #tpu.memory_space<vmem>>) attributes {dimension_semantics = [#tpu.dimension_semantics<parallel>, #tpu.dimension_semantics<arbitrary>], iteration_bounds = array<i64: 1, 1>, scalar_prefetch = 0 : i64, scratch_operands = 2 : i64, tpu.core_type = #tpu.core_type<tc>, window_params = [{transform_indices = @transform_0, window_bounds = array<i64: 2, 8, 16>}, {transform_indices = @transform_1, window_bounds = array<i64: 2, 8, 16>}, {transform_indices = @transform_2, window_bounds = array<i64: 2, 8, 16>}, {pipeline_mode = #tpu.pipeline_mode<synchronous>, transform_indices = @transform_3, window_bounds = array<i64: 16, 32>}, {pipeline_mode = #tpu.pipeline_mode<synchronous>, transform_indices = @transform_4, window_bounds = array<i64: 1, 32>}, {pipeline_mode = #tpu.pipeline_mode<synchronous>, transform_indices = @transform_5, window_bounds = array<i64: 16, 32>}, {pipeline_mode = #tpu.pipeline_mode<synchronous>, transform_indices = @transform_6, window_bounds = array<i64: 1, 32>}, {pipeline_mode = #tpu.pipeline_mode<synchronous>, transform_indices = @transform_7, window_bounds = array<i64: 16, 32>}, {pipeline_mode = #tpu.pipeline_mode<synchronous>, transform_indices = @transform_8, window_bounds = array<i64: 1, 32>}, {transform_indices = @transform_9, window_bounds = array<i64: 2, 8, 32>}, {transform_indices = @transform_10, window_bounds = array<i64: 2, 8, 8>}]} {
    %c0_i32 = arith.constant 0 : i32
    %0 = arith.cmpi eq, %arg1, %c0_i32 : i32
    %1 = arith.extui %0 : i1 to i32
    %c0_i32_0 = arith.constant 0 : i32
    %2 = arith.cmpi ne, %1, %c0_i32_0 : i32
    scf.if %2 {
      %c0_23 = arith.constant 0 : index
      %c0_24 = arith.constant 0 : index
      %c0_25 = arith.constant 0 : index
      %31 = vector.load %arg3[%c0_23, %c0_24, %c0_25] : memref<2x8x16xbf16, #tpu.memory_space<vmem>>, vector<2x8x16xbf16>
      %32 = vector.shape_cast %31 : vector<2x8x16xbf16> to vector<16x16xbf16>
      %c0_26 = arith.constant 0 : index
      %c0_27 = arith.constant 0 : index
      %c0_28 = arith.constant 0 : index
      %33 = vector.load %arg4[%c0_26, %c0_27, %c0_28] : memref<2x8x16xbf16, #tpu.memory_space<vmem>>, vector<2x8x16xbf16>
      %34 = vector.shape_cast %33 : vector<2x8x16xbf16> to vector<16x16xbf16>
      %c0_29 = arith.constant 0 : index
      %c0_30 = arith.constant 0 : index
      %35 = vector.load %arg7[%c0_29, %c0_30] : memref<16x32xbf16, #tpu.memory_space<vmem>>, vector<16x32xbf16>
      %cst_31 = arith.constant dense<0.000000e+00> : vector<16x32xf32>
      %36 = tpu.matmul %32, %35, %cst_31 {dimension_numbers = #tpu.dot_dimension_numbers<[1], [0], [0], [1], [0, 0, 1, 1], [], []>} : vector<16x16xbf16>, vector<16x32xbf16>, vector<16x32xf32> -> vector<16x32xf32>
      %c0_32 = arith.constant 0 : index
      %c0_33 = arith.constant 0 : index
      %37 = vector.load %arg8[%c0_32, %c0_33] : memref<1x32xf32, #tpu.memory_space<vmem>>, vector<1x32xf32>
      %38 = vector.broadcast %37 : vector<1x32xf32> to vector<16x32xf32>
      %39 = arith.addf %36, %38 : vector<16x32xf32>
      %c0_34 = arith.constant 0 : index
      %c0_35 = arith.constant 0 : index
      %40 = vector.load %arg9[%c0_34, %c0_35] : memref<16x32xbf16, #tpu.memory_space<vmem>>, vector<16x32xbf16>
      %cst_36 = arith.constant dense<0.000000e+00> : vector<16x32xf32>
      %41 = tpu.matmul %34, %40, %cst_36 {dimension_numbers = #tpu.dot_dimension_numbers<[1], [0], [0], [1], [0, 0, 1, 1], [], []>} : vector<16x16xbf16>, vector<16x32xbf16>, vector<16x32xf32> -> vector<16x32xf32>
      %c0_37 = arith.constant 0 : index
      %c0_38 = arith.constant 0 : index
      %42 = vector.load %arg10[%c0_37, %c0_38] : memref<1x32xf32, #tpu.memory_space<vmem>>, vector<1x32xf32>
      %43 = vector.broadcast %42 : vector<1x32xf32> to vector<16x32xf32>
      %44 = arith.addf %41, %43 : vector<16x32xf32>
      %45 = vector.shape_cast %39 : vector<16x32xf32> to vector<2x8x32xf32>
      %46 = arith.truncf %45 : vector<2x8x32xf32> to vector<2x8x32xbf16>
      %c0_39 = arith.constant 0 : index
      %c0_40 = arith.constant 0 : index
      %c0_41 = arith.constant 0 : index
      %47 = vector.load %arg13[%c0_39, %c0_40, %c0_41] : memref<2x8x32xbf16, #tpu.memory_space<vmem>>, vector<2x8x32xbf16>
      tpu.vector_store %arg13[%c0_39, %c0_40, %c0_41], %46 {strides = array<i32>} : memref<2x8x32xbf16, #tpu.memory_space<vmem>>, vector<2x8x32xbf16>,
      %48 = vector.shape_cast %44 : vector<16x32xf32> to vector<2x8x32xf32>
      %49 = arith.truncf %48 : vector<2x8x32xf32> to vector<2x8x32xbf16>
      %c0_42 = arith.constant 0 : index
      %c0_43 = arith.constant 0 : index
      %c0_44 = arith.constant 0 : index
      %50 = vector.load %arg14[%c0_42, %c0_43, %c0_44] : memref<2x8x32xbf16, #tpu.memory_space<vmem>>, vector<2x8x32xbf16>
      tpu.vector_store %arg14[%c0_42, %c0_43, %c0_44], %49 {strides = array<i32>} : memref<2x8x32xbf16, #tpu.memory_space<vmem>>, vector<2x8x32xbf16>,
    } else {
    }
    %c0 = arith.constant 0 : index
    %c0_1 = arith.constant 0 : index
    %c0_2 = arith.constant 0 : index
    %3 = vector.load %arg2[%c0, %c0_1, %c0_2] : memref<2x8x16xbf16, #tpu.memory_space<vmem>>, vector<2x8x16xbf16>
    %4 = vector.shape_cast %3 : vector<2x8x16xbf16> to vector<16x16xbf16>
    %c0_3 = arith.constant 0 : index
    %c0_4 = arith.constant 0 : index
    %5 = vector.load %arg5[%c0_3, %c0_4] : memref<16x32xbf16, #tpu.memory_space<vmem>>, vector<16x32xbf16>
    %cst = arith.constant dense<0.000000e+00> : vector<16x32xf32>
    %6 = tpu.matmul %4, %5, %cst {dimension_numbers = #tpu.dot_dimension_numbers<[1], [0], [0], [1], [0, 0, 1, 1], [], []>} : vector<16x16xbf16>, vector<16x32xbf16>, vector<16x32xf32> -> vector<16x32xf32>
    %c0_5 = arith.constant 0 : index
    %c0_6 = arith.constant 0 : index
    %7 = vector.load %arg6[%c0_5, %c0_6] : memref<1x32xf32, #tpu.memory_space<vmem>>, vector<1x32xf32>
    %8 = vector.broadcast %7 : vector<1x32xf32> to vector<16x32xf32>
    %9 = arith.addf %6, %8 : vector<16x32xf32>
    %10 = vector.shape_cast %9 : vector<16x32xf32> to vector<2x8x32xf32>
    %11 = arith.truncf %10 : vector<2x8x32xf32> to vector<2x8x32xbf16>
    %c0_7 = arith.constant 0 : index
    %c0_8 = arith.constant 0 : index
    %c0_9 = arith.constant 0 : index
    %12 = vector.load %arg13[%c0_7, %c0_8, %c0_9] : memref<2x8x32xbf16, #tpu.memory_space<vmem>>, vector<2x8x32xbf16>
    "tpu.trace_start"() <{level = 10 : i32, message = "bqd,bkd->bqk"}> : () -> ()
    %cst_10 = arith.constant dense<0.000000e+00> : vector<2x8x8xf32>
    %13 = tpu.matmul %11, %12, %cst_10 {dimension_numbers = #tpu.dot_dimension_numbers<[2], [2], [1], [1], [0, 0, 0, 1, 1, 1], [0], [0]>} : vector<2x8x32xbf16>, vector<2x8x32xbf16>, vector<2x8x8xf32> -> vector<2x8x8xf32>
    "tpu.trace_stop"() : () -> ()
    %cst_11 = arith.constant dense<0xFF800000> : vector<2x8xf32>
    %14 = vector.multi_reduction <maximumf>, %13, %cst_11 [2] : vector<2x8x8xf32> to vector<2x8xf32>
    %15 = vector.shape_cast %14 : vector<2x8xf32> to vector<2x8x1xf32>
    %16 = vector.broadcast %15 : vector<2x8x1xf32> to vector<2x8x8xf32>
    %17 = arith.subf %13, %16 : vector<2x8x8xf32>
    %18 = arith.truncf %17 : vector<2x8x8xf32> to vector<2x8x8xbf16>
    %19 = math.exp %18 : vector<2x8x8xbf16>
    %20 = arith.extf %19 : vector<2x8x8xbf16> to vector<2x8x8xf32>
    %cst_12 = arith.constant dense<0.000000e+00> : vector<2x8xf32>
    %21 = vector.multi_reduction <add>, %20, %cst_12 [2] : vector<2x8x8xf32> to vector<2x8xf32>
    %22 = vector.shape_cast %21 : vector<2x8xf32> to vector<2x8x1xf32>
    %23 = tpu.reciprocal %22 {approx = true} : vector<2x8x1xf32> -> vector<2x8x1xf32>
    %24 = vector.broadcast %23 : vector<2x8x1xf32> to vector<2x8x8xf32>
    %25 = arith.mulf %20, %24 : vector<2x8x8xf32>
    %26 = arith.truncf %25 : vector<2x8x8xf32> to vector<2x8x8xbf16>
    %c0_13 = arith.constant 0 : index
    %c0_14 = arith.constant 0 : index
    %c0_15 = arith.constant 0 : index
    %27 = vector.load %arg14[%c0_13, %c0_14, %c0_15] : memref<2x8x32xbf16, #tpu.memory_space<vmem>>, vector<2x8x32xbf16>
    "tpu.trace_start"() <{level = 10 : i32, message = "bqk,bkd->bqd"}> : () -> ()
    %cst_16 = arith.constant dense<0.000000e+00> : vector<2x8x32xf32>
    %28 = tpu.matmul %26, %27, %cst_16 {dimension_numbers = #tpu.dot_dimension_numbers<[2], [1], [1], [2], [0, 0, 0, 1, 1, 2], [0], [0]>} : vector<2x8x8xbf16>, vector<2x8x32xbf16>, vector<2x8x32xf32> -> vector<2x8x32xf32>
    "tpu.trace_stop"() : () -> ()
    %c0_17 = arith.constant 0 : index
    %c0_18 = arith.constant 0 : index
    %c0_19 = arith.constant 0 : index
    %29 = vector.load %arg11[%c0_17, %c0_18, %c0_19] : memref<2x8x32xf32, #tpu.memory_space<vmem>>, vector<2x8x32xf32>
    tpu.vector_store %arg11[%c0_17, %c0_18, %c0_19], %28 {strides = array<i32>} : memref<2x8x32xf32, #tpu.memory_space<vmem>>, vector<2x8x32xf32>,
    %c0_20 = arith.constant 0 : index
    %c0_21 = arith.constant 0 : index
    %c0_22 = arith.constant 0 : index
    %30 = vector.load %arg12[%c0_20, %c0_21, %c0_22] : memref<2x8x8xf32, #tpu.memory_space<vmem>>, vector<2x8x8xf32>
    tpu.vector_store %arg12[%c0_20, %c0_21, %c0_22], %25 {strides = array<i32>} : memref<2x8x8xf32, #tpu.memory_space<vmem>>, vector<2x8x8xf32>,
    return
  }
  func.func @transform_0(%arg0: i32, %arg1: i32) -> (i32, i32, i32) {
    %c0_i32 = arith.constant 0 : i32
    %c0_i32_0 = arith.constant 0 : i32
    return %arg0, %arg1, %c0_i32 : i32, i32, i32
  }
  func.func @transform_1(%arg0: i32, %arg1: i32) -> (i32, i32, i32) {
    %c0_i32 = arith.constant 0 : i32
    %c0_i32_0 = arith.constant 0 : i32
    %c0_i32_1 = arith.constant 0 : i32
    return %arg0, %c0_i32, %c0_i32_0 : i32, i32, i32
  }
  func.func @transform_2(%arg0: i32, %arg1: i32) -> (i32, i32, i32) {
    %c0_i32 = arith.constant 0 : i32
    %c0_i32_0 = arith.constant 0 : i32
    %c0_i32_1 = arith.constant 0 : i32
    return %arg0, %c0_i32, %c0_i32_0 : i32, i32, i32
  }
  func.func @transform_3(%arg0: i32, %arg1: i32) -> (i32, i32) {
    %c0_i32 = arith.constant 0 : i32
    %c0_i32_0 = arith.constant 0 : i32
    %c0_i32_1 = arith.constant 0 : i32
    return %c0_i32, %c0_i32_0 : i32, i32
  }
  func.func @transform_4(%arg0: i32, %arg1: i32) -> (i32, i32) {
    %c0_i32 = arith.constant 0 : i32
    %c0_i32_0 = arith.constant 0 : i32
    %c0_i32_1 = arith.constant 0 : i32
    return %c0_i32, %c0_i32_0 : i32, i32
  }
  func.func @transform_5(%arg0: i32, %arg1: i32) -> (i32, i32) {
    %c0_i32 = arith.constant 0 : i32
    %c0_i32_0 = arith.constant 0 : i32
    %c0_i32_1 = arith.constant 0 : i32
    return %c0_i32, %c0_i32_0 : i32, i32
  }
  func.func @transform_6(%arg0: i32, %arg1: i32) -> (i32, i32) {
    %c0_i32 = arith.constant 0 : i32
    %c0_i32_0 = arith.constant 0 : i32
    %c0_i32_1 = arith.constant 0 : i32
    return %c0_i32, %c0_i32_0 : i32, i32
  }
  func.func @transform_7(%arg0: i32, %arg1: i32) -> (i32, i32) {
    %c0_i32 = arith.constant 0 : i32
    %c0_i32_0 = arith.constant 0 : i32
    %c0_i32_1 = arith.constant 0 : i32
    return %c0_i32, %c0_i32_0 : i32, i32
  }
  func.func @transform_8(%arg0: i32, %arg1: i32) -> (i32, i32) {
    %c0_i32 = arith.constant 0 : i32
    %c0_i32_0 = arith.constant 0 : i32
    %c0_i32_1 = arith.constant 0 : i32
    return %c0_i32, %c0_i32_0 : i32, i32
  }
  func.func @transform_9(%arg0: i32, %arg1: i32) -> (i32, i32, i32) {
    %c0_i32 = arith.constant 0 : i32
    %c0_i32_0 = arith.constant 0 : i32
    return %arg0, %arg1, %c0_i32 : i32, i32, i32
  }
  func.func @transform_10(%arg0: i32, %arg1: i32) -> (i32, i32, i32) {
    %c0_i32 = arith.constant 0 : i32
    %c0_i32_0 = arith.constant 0 : i32
    return %arg0, %arg1, %c0_i32 : i32, i32, i32
  }
}

</mosaic_0001>

<llo_original>
// kernel: tpu_custom_call.1
$region0: #{tpu_custom_call.1}
  #allocation0 [shape = 'u32[]', space=smem, size = 0x4, offset = 0x4, fixed_abs, tag = 'smem constant byte address 0x4 - core index']
  #allocation1 [shape = 'u32[72,128]{1,0:T(1,128)}', space=vmem, size = 0x9000, scoped, tag = 'internal scratch']
  #allocation2 [shape = 'bf16[2,8,32]{2,1,0:T(8,128)(2,1)}', space=vmem, size = 0x1000, scoped, tag = 'scratch operand']
  #allocation3 [shape = 'bf16[2,8,32]{2,1,0:T(8,128)(2,1)}', space=vmem, size = 0x1000, scoped, tag = 'scratch operand']
  %s0 = inlined_call_operand.hbm [shape: bf16[2,8,16], index: 0, kind: input, shape index: {}]
  %s1 = inlined_call_operand.hbm [shape: bf16[2,8,16], index: 1, kind: input, shape index: {}]
  %s2 = inlined_call_operand.hbm [shape: bf16[2,8,16], index: 2, kind: input, shape index: {}]
  %s3 = inlined_call_operand.hbm [shape: bf16[16,32], index: 3, kind: input, shape index: {}]
  %s4 = inlined_call_operand.vmem [shape: f32[1,32], index: 4, kind: input, shape index: {}]
  %s5 = inlined_call_operand.hbm [shape: bf16[16,32], index: 5, kind: input, shape index: {}]
  %s6 = inlined_call_operand.vmem [shape: f32[1,32], index: 6, kind: input, shape index: {}]
  %s7 = inlined_call_operand.hbm [shape: bf16[16,32], index: 7, kind: input, shape index: {}]
  %s8 = inlined_call_operand.vmem [shape: f32[1,32], index: 8, kind: input, shape index: {}]
  %s9 = inlined_call_operand.hbm [shape: f32[2,8,32], index: 9, kind: output, shape index: {0}]
  %s10 = inlined_call_operand.hbm [shape: f32[2,8,8], index: 10, kind: output, shape index: {1}]
  %11 = xla_tuple %s9, %s10
  %s12 = sld [smem:[#allocation0]]
  $region82: #{tpu_custom_call.1} parent=0
    _
  %s14 = ssub.s32 1, %s12
  %s15 = scalar_select 0, %s14, %s12
  $region1: #{tpu_custom_call.1} parent=0
    #allocation4 [shape = 'u8[4096]{0}', space=vmem, size = 0x1000, scoped, tag = 'input window, operand 0, single buffered']
    #allocation5 [shape = 's32[1]{0}', space=sflag, size = 0x4, scoped, tag = 'scoped memory for tpu_custom_call.1']
    #allocation6 [shape = 's32[1]{0}', space=sflag, size = 0x4, scoped, tag = 'scoped memory for tpu_custom_call.1']
    #allocation7 [shape = 'u8[4096]{0}', space=vmem, size = 0x1000, scoped, tag = 'input window, operand 1, single buffered']
    #allocation8 [shape = 's32[1]{0}', space=sflag, size = 0x4, scoped, tag = 'scoped memory for tpu_custom_call.1']
    #allocation9 [shape = 'u8[4096]{0}', space=vmem, size = 0x1000, scoped, tag = 'input window, operand 2, single buffered']
    #allocation10 [shape = 'u8[4096]{0}', space=vmem, size = 0x1000, scoped, tag = 'input window, operand 3, single buffered']
    #allocation11 [shape = 's32[1]{0}', space=sflag, size = 0x4, scoped, tag = 'scoped memory for tpu_custom_call.1']
    #allocation12 [shape = 'u8[4096]{0}', space=vmem, size = 0x1000, scoped, tag = 'input window, operand 5, single buffered']
    #allocation13 [shape = 'u8[4096]{0}', space=vmem, size = 0x1000, scoped, tag = 'input window, operand 7, single buffered']
    #allocation14 [shape = 's32[1]{0}', space=sflag, size = 0x4, scoped, tag = 'scoped memory for tpu_custom_call.1']
    #allocation15 [shape = 'u8[8192]{0}', space=vmem, size = 0x2000, scoped, tag = 'output window, operand 0, single buffered']
    #allocation16 [shape = 'u8[8192]{0}', space=vmem, size = 0x2000, scoped, tag = 'output window, operand 1, single buffered']
    #allocation17 [shape = 's32[1]{0}', space=sflag, size = 0x4, scoped, tag = 'scoped memory for tpu_custom_call.1']
    %16 = vsyncpa [#allocation5], 0
    %17 = vsyncpa [#allocation8], 0
    %18 = vsyncpa [#allocation11], 0
    %19 = vsyncpa [#allocation14], 0
    %20 = vsyncpa [#allocation6], 0
    %21 = vsyncpa [#allocation17], 0
    // Predicated region
    $region2: #{tpu_custom_call.1} parent=1 // pred_check
      _
    $region3: #{tpu_custom_call.1} parent=1 // pred_check_branch
      %23 = sbr.rel (0) target = $region5
    $region4: #{tpu_custom_call.1} parent=1 // pred_region
      %25 = vsyncadd [#allocation5], 0
      %s26 = sshll.u32 %s0, 4
      %s27 = int_to_ptr.hbm [resolvable:$true] %s26
      %s28 = sshll.u32 [#allocation4], 4
      %s29 = int_to_ptr.vmem [resolvable:$true] %s28
      %34 = dma.hbm_to_vmem [thread:$0]  %s27, 128, %s29, [#allocation5], 64, 64, 4
    $region5: #{tpu_custom_call.1} parent=1 // pred_fallthru
      _
    // Predicated region
    $region6: #{tpu_custom_call.1} parent=1 // pred_check
      _
    $region7: #{tpu_custom_call.1} parent=1 // pred_check_branch
      %36 = sbr.rel (0) target = $region9
    $region8: #{tpu_custom_call.1} parent=1 // pred_region
      %38 = vsyncadd [#allocation8], 0
      %s39 = sshll.u32 %s1, 4
      %s40 = int_to_ptr.hbm [resolvable:$true] %s39
      %s41 = sshll.u32 [#allocation7], 4
      %s42 = int_to_ptr.vmem [resolvable:$true] %s41
      %47 = dma.hbm_to_vmem [thread:$0]  %s40, 128, %s42, [#allocation8], 64, 64, 4
    $region9: #{tpu_custom_call.1} parent=1 // pred_fallthru
      _
    // Predicated region
    $region10: #{tpu_custom_call.1} parent=1 // pred_check
      _
    $region11: #{tpu_custom_call.1} parent=1 // pred_check_branch
      %49 = sbr.rel (0) target = $region13
    $region12: #{tpu_custom_call.1} parent=1 // pred_region
      %51 = vsyncadd [#allocation8], 0
      %s52 = sshll.u32 %s2, 4
      %s53 = int_to_ptr.hbm [resolvable:$true] %s52
      %s54 = sshll.u32 [#allocation9], 4
      %s55 = int_to_ptr.vmem [resolvable:$true] %s54
      %60 = dma.hbm_to_vmem [thread:$0]  %s53, 128, %s55, [#allocation8], 64, 64, 4
    $region13: #{tpu_custom_call.1} parent=1 // pred_fallthru
      _
    // Predicated region
    $region14: #{tpu_custom_call.1} parent=1 // pred_check
      _
    $region15: #{tpu_custom_call.1} parent=1 // pred_check_branch
      %62 = sbr.rel (0) target = $region17
    $region16: #{tpu_custom_call.1} parent=1 // pred_region
      %64 = vsyncadd [#allocation11], 0
      %s65 = sshll.u32 %s3, 4
      %s66 = int_to_ptr.hbm [resolvable:$true] %s65
      %s67 = sshll.u32 [#allocation10], 4
      %s68 = int_to_ptr.vmem [resolvable:$true] %s67
      %73 = dma.hbm_to_vmem [thread:$0]  %s66, 128, %s68, [#allocation11], 64, 64, 4
    $region17: #{tpu_custom_call.1} parent=1 // pred_fallthru
      _
    // Predicated region
    $region18: #{tpu_custom_call.1} parent=1 // pred_check
      _
    $region19: #{tpu_custom_call.1} parent=1 // pred_check_branch
      %75 = sbr.rel (0) target = $region21
    $region20: #{tpu_custom_call.1} parent=1 // pred_region
      _
    $region21: #{tpu_custom_call.1} parent=1 // pred_fallthru
      _
    // Predicated region
    $region22: #{tpu_custom_call.1} parent=1 // pred_check
      _
    $region23: #{tpu_custom_call.1} parent=1 // pred_check_branch
      %77 = sbr.rel (0) target = $region25
    $region24: #{tpu_custom_call.1} parent=1 // pred_region
      %79 = vsyncadd [#allocation11], 0
      %s80 = sshll.u32 %s5, 4
      %s81 = int_to_ptr.hbm [resolvable:$true] %s80
      %s82 = sshll.u32 [#allocation12], 4
      %s83 = int_to_ptr.vmem [resolvable:$true] %s82
      %88 = dma.hbm_to_vmem [thread:$0]  %s81, 128, %s83, [#allocation11], 64, 64, 4
    $region25: #{tpu_custom_call.1} parent=1 // pred_fallthru
      _
    // Predicated region
    $region26: #{tpu_custom_call.1} parent=1 // pred_check
      _
    $region27: #{tpu_custom_call.1} parent=1 // pred_check_branch
      %90 = sbr.rel (0) target = $region29
    $region28: #{tpu_custom_call.1} parent=1 // pred_region
      _
    $region29: #{tpu_custom_call.1} parent=1 // pred_fallthru
      _
    // Predicated region
    $region30: #{tpu_custom_call.1} parent=1 // pred_check
      _
    $region31: #{tpu_custom_call.1} parent=1 // pred_check_branch
      %92 = sbr.rel (0) target = $region33
    $region32: #{tpu_custom_call.1} parent=1 // pred_region
      %94 = vsyncadd [#allocation14], 0
      %s95 = sshll.u32 %s7, 4
      %s96 = int_to_ptr.hbm [resolvable:$true] %s95
      %s97 = sshll.u32 [#allocation13], 4
      %s98 = int_to_ptr.vmem [resolvable:$true] %s97
      %103 = dma.hbm_to_vmem [thread:$0]  %s96, 128, %s98, [#allocation14], 64, 64, 4
    $region33: #{tpu_custom_call.1} parent=1 // pred_fallthru
      _
    // Predicated region
    $region34: #{tpu_custom_call.1} parent=1 // pred_check
      _
    $region35: #{tpu_custom_call.1} parent=1 // pred_check_branch
      %105 = sbr.rel (0) target = $region37
    $region36: #{tpu_custom_call.1} parent=1 // pred_region
      _
    $region37: #{tpu_custom_call.1} parent=1 // pred_fallthru
      _
    // Predicated region
    $region38: #{tpu_custom_call.1} parent=1 // pred_check
      _
    $region39: #{tpu_custom_call.1} parent=1 // pred_check_branch
      %107 = sbr.rel (0) target = $region41
    $region40: #{tpu_custom_call.1} parent=1 // pred_region
      %109 = dma.done [#allocation5], 128
    $region41: #{tpu_custom_call.1} parent=1 // pred_fallthru
      _
    // Predicated region
    $region42: #{tpu_custom_call.1} parent=1 // pred_check
      _
    $region43: #{tpu_custom_call.1} parent=1 // pred_check_branch
      %111 = sbr.rel (0) target = $region45
    $region44: #{tpu_custom_call.1} parent=1 // pred_region
      %113 = dma.done [#allocation8], 128
    $region45: #{tpu_custom_call.1} parent=1 // pred_fallthru
      _
    // Predicated region
    $region46: #{tpu_custom_call.1} parent=1 // pred_check
      _
    $region47: #{tpu_custom_call.1} parent=1 // pred_check_branch
      %115 = sbr.rel (0) target = $region49
    $region48: #{tpu_custom_call.1} parent=1 // pred_region
      %117 = dma.done [#allocation8], 128
    $region49: #{tpu_custom_call.1} parent=1 // pred_fallthru
      _
    // Predicated region
    $region50: #{tpu_custom_call.1} parent=1 // pred_check
      _
    $region51: #{tpu_custom_call.1} parent=1 // pred_check_branch
      %119 = sbr.rel (0) target = $region53
    $region52: #{tpu_custom_call.1} parent=1 // pred_region
      %121 = dma.done [#allocation11], 128
    $region53: #{tpu_custom_call.1} parent=1 // pred_fallthru
      _
    // Predicated region
    $region54: #{tpu_custom_call.1} parent=1 // pred_check
      _
    $region55: #{tpu_custom_call.1} parent=1 // pred_check_branch
      %123 = sbr.rel (0) target = $region57
    $region56: #{tpu_custom_call.1} parent=1 // pred_region
      %125 = dma.done [#allocation11], 128
    $region57: #{tpu_custom_call.1} parent=1 // pred_fallthru
      _
    // Predicated region
    $region58: #{tpu_custom_call.1} parent=1 // pred_check
      _
    $region59: #{tpu_custom_call.1} parent=1 // pred_check_branch
      %127 = sbr.rel (0) target = $region61
    $region60: #{tpu_custom_call.1} parent=1 // pred_region
      %129 = dma.done [#allocation14], 128
    $region61: #{tpu_custom_call.1} parent=1 // pred_fallthru
      _
    %p131 = scmp.eq.s32.totalorder 0, 0
    // Predicated region
    $region62: #{tpu_custom_call.1} parent=1 // pred_check
      %p132 = pneg %p131
    $region63: #{tpu_custom_call.1} parent=1 // pred_check_branch
      %134 = sbr.rel (%p132) target = $region65
    $region64: #{tpu_custom_call.1} parent=1 // pred_region
      %v135 = vld [vmem:[#allocation7] sm:$0xf]
      %v136 = vld [vmem:[#allocation7 + $0x4] sm:$0xf]
      %v137 = vld [vmem:[#allocation9] sm:$0xf]
      %v138 = vld [vmem:[#allocation9 + $0x4] sm:$0xf]
      %v139 = vld [vmem:[#allocation12] sm:$0xf]
      %v140 = vld [vmem:[#allocation12 + $0x4] sm:$0xf]
      %v141 = vld [vmem:[%s6] sm:$0x1]
      %v143 = vperm.slane %v141, 0
      %v147 = vunpack.c.l.b16 %v135
      %v148 = vunpack.c.l.b16 %v136
      %v149 = vpack.c.b16 %v148, %v147
      %v152 = vunpack.c.l.b16 %v139
      %v153 = vunpack.c.l.b16 %v140
      %v154 = vpack.c.b16 %v153, %v152
      %vm156 = vcmask 130048
      %v158 = vsel %vm156, %v149, 0
      %160 = vmatpush.bf16.msra.mxu0 0
      %161 = vmatpush.bf16.msra.mxu0 0
      %162 = vmatpush.bf16.msra.mxu0 0
      %163 = vmatpush.bf16.msra.mxu0 0
      %164 = vmatpush.bf16.msra.mxu0 0
      %165 = vmatpush.bf16.msra.mxu0 0
      %166 = vmatpush.bf16.msra.mxu0 0
      %167 = vmatpush.bf16.msra.mxu0 %v154
      %168 = vmatmul.bf16.gmra.mxu0 %v158
      %v169 = vpop.f32.mrf.mxu0
      %v170 = vadd.f32 %v143, %v169
      %v171 = vpop.f32.mrf.mxu0
      %v172 = vadd.f32 %v143, %v171
      %173 = vdwg.mxu0
      %v174 = vld [vmem:[#allocation13] sm:$0xf]
      %v175 = vld [vmem:[#allocation13 + $0x4] sm:$0xf]
      %v176 = vld [vmem:[%s8] sm:$0x1]
      %v178 = vperm.slane %v176, 0
      %v182 = vunpack.c.l.b16 %v137
      %v183 = vunpack.c.l.b16 %v138
      %v184 = vpack.c.b16 %v183, %v182
      %v187 = vunpack.c.l.b16 %v174
      %v188 = vunpack.c.l.b16 %v175
      %v189 = vpack.c.b16 %v188, %v187
      %v192 = vsel %vm156, %v184, 0
      %194 = vmatpush.bf16.msra.mxu0 0
      %195 = vmatpush.bf16.msra.mxu0 0
      %196 = vmatpush.bf16.msra.mxu0 0
      %197 = vmatpush.bf16.msra.mxu0 0
      %198 = vmatpush.bf16.msra.mxu0 0
      %199 = vmatpush.bf16.msra.mxu0 0
      %200 = vmatpush.bf16.msra.mxu0 0
      %201 = vmatpush.bf16.msra.mxu0 %v189
      %202 = vmatmul.bf16.gmra.mxu0 %v192
      %v203 = vpop.f32.mrf.mxu0
      %v204 = vadd.f32 %v178, %v203
      %v205 = vpop.f32.mrf.mxu0
      %v206 = vadd.f32 %v178, %v205
      %207 = vdwg.mxu0
      %v208 = vpack.c.bf16 %v170, %v170
      %v209 = vpack.c.bf16 %v172, %v172
      %vm210 = vcmask 257024
      %211 = vst.msk [vmem:[#allocation2] sm:$0xf] %vm210, %v208
      %212 = vst.msk [vmem:[#allocation2 + $0x4] sm:$0xf] %vm210, %v209
      %v213 = vpack.c.bf16 %v204, %v204
      %v214 = vpack.c.bf16 %v206, %v206
      %215 = vst.msk [vmem:[#allocation3] sm:$0xf] %vm210, %v213
      %216 = vst.msk [vmem:[#allocation3 + $0x4] sm:$0xf] %vm210, %v214
    $region65: #{tpu_custom_call.1} parent=1 // pred_fallthru
      _
    %v217 = vld [vmem:[#allocation4] sm:$0xf]
    %v218 = vld [vmem:[#allocation4 + $0x4] sm:$0xf]
    %v219 = vld [vmem:[#allocation10] sm:$0xf]
    %v220 = vld [vmem:[#allocation10 + $0x4] sm:$0xf]
    %v221 = vld [vmem:[%s4] sm:$0x1]
    %v223 = vperm.slane %v221, 0
    %v227 = vunpack.c.l.b16 %v217
    %v228 = vunpack.c.l.b16 %v218
    %v229 = vpack.c.b16 %v228, %v227
    %v232 = vunpack.c.l.b16 %v219
    %v233 = vunpack.c.l.b16 %v220
    %v234 = vpack.c.b16 %v233, %v232
    %vm236 = vcmask 130048
    %v238 = vsel %vm236, %v229, 0
    %240 = vmatpush.bf16.msra.mxu0 0
    %241 = vmatpush.bf16.msra.mxu0 0
    %242 = vmatpush.bf16.msra.mxu0 0
    %243 = vmatpush.bf16.msra.mxu0 0
    %244 = vmatpush.bf16.msra.mxu0 0
    %245 = vmatpush.bf16.msra.mxu0 0
    %246 = vmatpush.bf16.msra.mxu0 0
    %247 = vmatpush.bf16.msra.mxu0 %v234
    %248 = vmatmul.bf16.gmra.mxu0 %v238
    %v249 = vpop.f32.mrf.mxu0
    %v250 = vadd.f32 %v223, %v249
    %v251 = vpop.f32.mrf.mxu0
    %v252 = vadd.f32 %v223, %v251
    %253 = vdwg.mxu0
    %v254 = vpack.c.bf16 %v250, %v250
    %v255 = vpack.c.bf16 %v252, %v252
    %v256 = vld [vmem:[#allocation2] sm:$0xf]
    %v257 = vld [vmem:[#allocation2 + $0x4] sm:$0xf]
    %vm258 = vcmask 261120
    %v260 = vsel %vm258, %v254, 0
    %v263 = vsel %vm258, %v256, 0
    %265 = vmatpush.bf16.xpose.msra.mxu0 0
    %266 = vmatpush.bf16.xpose.msra.mxu0 0
    %267 = vmatpush.bf16.xpose.msra.mxu0 0
    %268 = vmatpush.bf16.xpose.msra.mxu0 0
    %269 = vmatpush.bf16.xpose.msra.mxu0 0
    %270 = vmatpush.bf16.xpose.msra.mxu0 0
    %271 = vmatpush.bf16.xpose.msra.mxu0 0
    %272 = vmatpush.bf16.xpose.msra.mxu0 %v263
    %273 = vmatmul.bf16.gmra.mxu0 %v260
    %v274 = vpop.f32.mrf.mxu0
    %v275 = vadd.f32 0.0, %v274
    %v276 = vpop.f32.mrf.mxu0
    %277 = vdwg.mxu0
    %v279 = vsel %vm258, %v255, 0
    %v282 = vsel %vm258, %v257, 0
    %284 = vmatpush.bf16.xpose.msra.mxu0 0
    %285 = vmatpush.bf16.xpose.msra.mxu0 0
    %286 = vmatpush.bf16.xpose.msra.mxu0 0
    %287 = vmatpush.bf16.xpose.msra.mxu0 0
    %288 = vmatpush.bf16.xpose.msra.mxu0 0
    %289 = vmatpush.bf16.xpose.msra.mxu0 0
    %290 = vmatpush.bf16.xpose.msra.mxu0 0
    %291 = vmatpush.bf16.xpose.msra.mxu0 %v282
    %292 = vmatmul.bf16.gmra.mxu0 %v279
    %v293 = vpop.f32.mrf.mxu0
    %v294 = vadd.f32 0.0, %v293
    %v295 = vpop.f32.mrf.mxu0
    %296 = vdwg.mxu0
    %vm297 = vcmask 64512
    %v298 = vsel %vm297, %v275, -inf
    %299 = vmax.xlane.f32.xlu0 %v298
    %v300 = vpop.xlane.xlu0 %299
    %v301 = vsel %vm297, %v294, -inf
    %302 = vmax.xlane.f32.xlu0 %v301
    %v303 = vpop.xlane.xlu0 %302
    %v304 = vsub.f32 %v275, %v300
    %v305 = vsub.f32 %v294, %v303
    %v306 = vpack.c.bf16 %v304, %v304
    %v307 = vpack.c.bf16 %v305, %v305
    %v308 = vunpack.c.l.bf16 %v306
    %v309 = vunpack.c.l.bf16 %v307
    %v310 = vmul.f32 %v308, 1.442695
    %v311 = vpow.pop %v310
    %v312 = vmul.f32 %v309, 1.442695
    %v313 = vpow.pop %v312
    %v314 = vpack.c.bf16 %v311, %v311
    %v315 = vpack.c.bf16 %v313, %v313
    %v316 = vunpack.c.l.bf16 %v314
    %v317 = vunpack.c.l.bf16 %v315
    %v318 = vsel %vm297, %v316, 0.0
    %319 = vadd.xlane.f32.xlu0 %v318
    %v320 = vpop.xlane.xlu0 %319
    %v321 = vsel %vm297, %v317, 0.0
    %322 = vadd.xlane.f32.xlu0 %v321
    %v323 = vpop.xlane.xlu0 %322
    %v324 = vrcp.pop %v320
    %v325 = vrcp.pop %v323
    %v326 = vmul.f32 %v316, %v324
    %v327 = vmul.f32 %v317, %v325
    %v328 = vpack.c.bf16 %v326, %v326
    %v329 = vpack.c.bf16 %v327, %v327
    %v330 = vld [vmem:[#allocation3] sm:$0xf]
    %v331 = vld [vmem:[#allocation3 + $0x4] sm:$0xf]
    %v333 = vsel %vm297, %v328, 0
    %vm335 = vcmask 1043456
    %v337 = vsel %vm335, %v330, 0
    %339 = vmatpush.bf16.msra.mxu0 0
    %340 = vmatpush.bf16.msra.mxu0 0
    %341 = vmatpush.bf16.msra.mxu0 0
    %342 = vmatpush.bf16.msra.mxu0 0
    %343 = vmatpush.bf16.msra.mxu0 0
    %344 = vmatpush.bf16.msra.mxu0 0
    %345 = vmatpush.bf16.msra.mxu0 0
    %346 = vmatpush.bf16.msra.mxu0 %v337
    %347 = vmatmul.bf16.gmra.mxu0 %v333
    %v348 = vpop.f32.mrf.mxu0
    %v349 = vadd.f32 0.0, %v348
    %v350 = vpop.f32.mrf.mxu0
    %351 = vdwg.mxu0
    %v353 = vsel %vm297, %v329, 0
    %v356 = vsel %vm335, %v331, 0
    %358 = vmatpush.bf16.msra.mxu0 0
    %359 = vmatpush.bf16.msra.mxu0 0
    %360 = vmatpush.bf16.msra.mxu0 0
    %361 = vmatpush.bf16.msra.mxu0 0
    %362 = vmatpush.bf16.msra.mxu0 0
    %363 = vmatpush.bf16.msra.mxu0 0
    %364 = vmatpush.bf16.msra.mxu0 0
    %365 = vmatpush.bf16.msra.mxu0 %v356
    %366 = vmatmul.bf16.gmra.mxu0 %v353
    %v367 = vpop.f32.mrf.mxu0
    %v368 = vadd.f32 0.0, %v367
    %v369 = vpop.f32.mrf.mxu0
    %370 = vdwg.mxu0
    %371 = vst.msk [vmem:[#allocation15] sm:$0xff] %vm258, %v349
    %372 = vst.msk [vmem:[#allocation15 + $0x8] sm:$0xff] %vm258, %v368
    %373 = vst.msk [vmem:[#allocation16] sm:$0xff] %vm297, %v326
    %374 = vst.msk [vmem:[#allocation16 + $0x8] sm:$0xff] %vm297, %v327
    // Predicated region
    $region66: #{tpu_custom_call.1} parent=1 // pred_check
      _
    $region67: #{tpu_custom_call.1} parent=1 // pred_check_branch
      %376 = sbr.rel (0) target = $region69
    $region68: #{tpu_custom_call.1} parent=1 // pred_region
      %378 = vsyncadd [#allocation6], 0
      %s379 = sshll.u32 [#allocation15], 4
      %s380 = int_to_ptr.vmem [resolvable:$true] %s379
      %s381 = sshll.u32 %s9, 4
      %s382 = int_to_ptr.hbm [resolvable:$true] %s381
      %387 = dma.vmem_to_hbm [thread:$0]  %s380, 256, %s382, [#allocation6], 128, 128, 8
    $region69: #{tpu_custom_call.1} parent=1 // pred_fallthru
      _
    // Predicated region
    $region70: #{tpu_custom_call.1} parent=1 // pred_check
      _
    $region71: #{tpu_custom_call.1} parent=1 // pred_check_branch
      %389 = sbr.rel (0) target = $region73
    $region72: #{tpu_custom_call.1} parent=1 // pred_region
      %391 = vsyncadd [#allocation17], 0
      %s392 = sshll.u32 [#allocation16], 4
      %s393 = int_to_ptr.vmem [resolvable:$true] %s392
      %s394 = sshll.u32 %s10, 4
      %s395 = int_to_ptr.hbm [resolvable:$true] %s394
      %400 = dma.vmem_to_hbm [thread:$0]  %s393, 256, %s395, [#allocation17], 128, 128, 8
    $region73: #{tpu_custom_call.1} parent=1 // pred_fallthru
      _
    // Predicated region
    $region74: #{tpu_custom_call.1} parent=1 // pred_check
      _
    $region75: #{tpu_custom_call.1} parent=1 // pred_check_branch
      %402 = sbr.rel (0) target = $region77
    $region76: #{tpu_custom_call.1} parent=1 // pred_region
      %404 = dma.done [#allocation6], 256
    $region77: #{tpu_custom_call.1} parent=1 // pred_fallthru
      _
    // Predicated region
    $region78: #{tpu_custom_call.1} parent=1 // pred_check
      _
    $region79: #{tpu_custom_call.1} parent=1 // pred_check_branch
      %406 = sbr.rel (0) target = $region81
    $region80: #{tpu_custom_call.1} parent=1 // pred_region
      %408 = dma.done [#allocation17], 256
    $region81: #{tpu_custom_call.1} parent=1 // pred_fallthru
      _
    %409 = vsyncpa [#allocation5], 1
    %410 = vsyncpa [#allocation8], 1
    %411 = vsyncpa [#allocation11], 1
    %412 = vsyncpa [#allocation14], 1
    %413 = vsyncpa [#allocation6], 1
    %414 = vsyncpa [#allocation17], 1

// kernel: tpu_custom_call.1
$region0: #{tpu_custom_call.1}
  #allocation0 [shape = 'u32[]', space=smem, size = 0x4, offset = 0x4, fixed_abs, tag = 'smem constant byte address 0x4 - core index']
  #allocation1 [shape = 'u32[72,128]{1,0:T(1,128)}', space=vmem, size = 0x9000, scoped, tag = 'internal scratch']
  #allocation2 [shape = 'bf16[2,8,32]{2,1,0:T(8,128)(2,1)}', space=vmem, size = 0x1000, scoped, tag = 'scratch operand']
  #allocation3 [shape = 'bf16[2,8,32]{2,1,0:T(8,128)(2,1)}', space=vmem, size = 0x1000, scoped, tag = 'scratch operand']
  %s0 = inlined_call_operand.hbm [shape: bf16[2,8,16], index: 0, kind: input, shape index: {}]
  %s1 = inlined_call_operand.hbm [shape: bf16[2,8,16], index: 1, kind: input, shape index: {}]
  %s2 = inlined_call_operand.hbm [shape: bf16[2,8,16], index: 2, kind: input, shape index: {}]
  %s3 = inlined_call_operand.hbm [shape: bf16[16,32], index: 3, kind: input, shape index: {}]
  %s4 = inlined_call_operand.vmem [shape: f32[1,32], index: 4, kind: input, shape index: {}]
  %s5 = inlined_call_operand.hbm [shape: bf16[16,32], index: 5, kind: input, shape index: {}]
  %s6 = inlined_call_operand.vmem [shape: f32[1,32], index: 6, kind: input, shape index: {}]
  %s7 = inlined_call_operand.hbm [shape: bf16[16,32], index: 7, kind: input, shape index: {}]
  %s8 = inlined_call_operand.vmem [shape: f32[1,32], index: 8, kind: input, shape index: {}]
  %s9 = inlined_call_operand.hbm [shape: f32[2,8,32], index: 9, kind: output, shape index: {0}]
  %s10 = inlined_call_operand.hbm [shape: f32[2,8,8], index: 10, kind: output, shape index: {1}]
  %11 = xla_tuple %s9, %s10
  %s12 = sld [smem:[#allocation0]]
  $region82: #{tpu_custom_call.1} parent=0
    _
  %s14 = ssub.s32 1, %s12
  %s15 = scalar_select 0, %s14, %s12
  $region1: #{tpu_custom_call.1} parent=0
    #allocation4 [shape = 'u8[4096]{0}', space=vmem, size = 0x1000, scoped, tag = 'input window, operand 0, single buffered']
    #allocation5 [shape = 's32[1]{0}', space=sflag, size = 0x4, scoped, tag = 'scoped memory for tpu_custom_call.1']
    #allocation6 [shape = 's32[1]{0}', space=sflag, size = 0x4, scoped, tag = 'scoped memory for tpu_custom_call.1']
    #allocation7 [shape = 'u8[4096]{0}', space=vmem, size = 0x1000, scoped, tag = 'input window, operand 1, single buffered']
    #allocation8 [shape = 's32[1]{0}', space=sflag, size = 0x4, scoped, tag = 'scoped memory for tpu_custom_call.1']
    #allocation9 [shape = 'u8[4096]{0}', space=vmem, size = 0x1000, scoped, tag = 'input window, operand 2, single buffered']
    #allocation10 [shape = 'u8[4096]{0}', space=vmem, size = 0x1000, scoped, tag = 'input window, operand 3, single buffered']
    #allocation11 [shape = 's32[1]{0}', space=sflag, size = 0x4, scoped, tag = 'scoped memory for tpu_custom_call.1']
    #allocation12 [shape = 'u8[4096]{0}', space=vmem, size = 0x1000, scoped, tag = 'input window, operand 5, single buffered']
    #allocation13 [shape = 'u8[4096]{0}', space=vmem, size = 0x1000, scoped, tag = 'input window, operand 7, single buffered']
    #allocation14 [shape = 's32[1]{0}', space=sflag, size = 0x4, scoped, tag = 'scoped memory for tpu_custom_call.1']
    #allocation15 [shape = 'u8[8192]{0}', space=vmem, size = 0x2000, scoped, tag = 'output window, operand 0, single buffered']
    #allocation16 [shape = 'u8[8192]{0}', space=vmem, size = 0x2000, scoped, tag = 'output window, operand 1, single buffered']
    #allocation17 [shape = 's32[1]{0}', space=sflag, size = 0x4, scoped, tag = 'scoped memory for tpu_custom_call.1']
    %16 = vsyncpa [#allocation5], 0
    %17 = vsyncpa [#allocation8], 0
    %18 = vsyncpa [#allocation11], 0
    %19 = vsyncpa [#allocation14], 0
    %20 = vsyncpa [#allocation6], 0
    %21 = vsyncpa [#allocation17], 0
    // Predicated region
    $region2: #{tpu_custom_call.1} parent=1 // pred_check
      _
    $region3: #{tpu_custom_call.1} parent=1 // pred_check_branch
      %23 = sbr.rel (0) target = $region5
    $region4: #{tpu_custom_call.1} parent=1 // pred_region
      %25 = vsyncadd [#allocation5], 0
      %s26 = sshll.u32 %s0, 4
      %s27 = int_to_ptr.hbm [resolvable:$true] %s26
      %s28 = sshll.u32 [#allocation4], 4
      %s29 = int_to_ptr.vmem [resolvable:$true] %s28
      %34 = dma.hbm_to_vmem [thread:$0]  %s27, 128, %s29, [#allocation5], 64, 64, 4
    $region5: #{tpu_custom_call.1} parent=1 // pred_fallthru
      _
    // Predicated region
    $region6: #{tpu_custom_call.1} parent=1 // pred_check
      _
    $region7: #{tpu_custom_call.1} parent=1 // pred_check_branch
      %36 = sbr.rel (0) target = $region9
    $region8: #{tpu_custom_call.1} parent=1 // pred_region
      %38 = vsyncadd [#allocation8], 0
      %s39 = sshll.u32 %s1, 4
      %s40 = int_to_ptr.hbm [resolvable:$true] %s39
      %s41 = sshll.u32 [#allocation7], 4
      %s42 = int_to_ptr.vmem [resolvable:$true] %s41
      %47 = dma.hbm_to_vmem [thread:$0]  %s40, 128, %s42, [#allocation8], 64, 64, 4
    $region9: #{tpu_custom_call.1} parent=1 // pred_fallthru
      _
    // Predicated region
    $region10: #{tpu_custom_call.1} parent=1 // pred_check
      _
    $region11: #{tpu_custom_call.1} parent=1 // pred_check_branch
      %49 = sbr.rel (0) target = $region13
    $region12: #{tpu_custom_call.1} parent=1 // pred_region
      %51 = vsyncadd [#allocation8], 0
      %s52 = sshll.u32 %s2, 4
      %s53 = int_to_ptr.hbm [resolvable:$true] %s52
      %s54 = sshll.u32 [#allocation9], 4
      %s55 = int_to_ptr.vmem [resolvable:$true] %s54
      %60 = dma.hbm_to_vmem [thread:$0]  %s53, 128, %s55, [#allocation8], 64, 64, 4
    $region13: #{tpu_custom_call.1} parent=1 // pred_fallthru
      _
    // Predicated region
    $region14: #{tpu_custom_call.1} parent=1 // pred_check
      _
    $region15: #{tpu_custom_call.1} parent=1 // pred_check_branch
      %62 = sbr.rel (0) target = $region17
    $region16: #{tpu_custom_call.1} parent=1 // pred_region
      %64 = vsyncadd [#allocation11], 0
      %s65 = sshll.u32 %s3, 4
      %s66 = int_to_ptr.hbm [resolvable:$true] %s65
      %s67 = sshll.u32 [#allocation10], 4
      %s68 = int_to_ptr.vmem [resolvable:$true] %s67
      %73 = dma.hbm_to_vmem [thread:$0]  %s66, 128, %s68, [#allocation11], 64, 64, 4
    $region17: #{tpu_custom_call.1} parent=1 // pred_fallthru
      _
    // Predicated region
    $region18: #{tpu_custom_call.1} parent=1 // pred_check
      _
    $region19: #{tpu_custom_call.1} parent=1 // pred_check_branch
      %75 = sbr.rel (0) target = $region21
    $region20: #{tpu_custom_call.1} parent=1 // pred_region
      _
    $region21: #{tpu_custom_call.1} parent=1 // pred_fallthru
      _
    // Predicated region
    $region22: #{tpu_custom_call.1} parent=1 // pred_check
      _
    $region23: #{tpu_custom_call.1} parent=1 // pred_check_branch
      %77 = sbr.rel (0) target = $region25
    $region24: #{tpu_custom_call.1} parent=1 // pred_region
      %79 = vsyncadd [#allocation11], 0
      %s80 = sshll.u32 %s5, 4
      %s81 = int_to_ptr.hbm [resolvable:$true] %s80
      %s82 = sshll.u32 [#allocation12], 4
      %s83 = int_to_ptr.vmem [resolvable:$true] %s82
      %88 = dma.hbm_to_vmem [thread:$0]  %s81, 128, %s83, [#allocation11], 64, 64, 4
    $region25: #{tpu_custom_call.1} parent=1 // pred_fallthru
      _
    // Predicated region
    $region26: #{tpu_custom_call.1} parent=1 // pred_check
      _
    $region27: #{tpu_custom_call.1} parent=1 // pred_check_branch
      %90 = sbr.rel (0) target = $region29
    $region28: #{tpu_custom_call.1} parent=1 // pred_region
      _
    $region29: #{tpu_custom_call.1} parent=1 // pred_fallthru
      _
    // Predicated region
    $region30: #{tpu_custom_call.1} parent=1 // pred_check
      _
    $region31: #{tpu_custom_call.1} parent=1 // pred_check_branch
      %92 = sbr.rel (0) target = $region33
    $region32: #{tpu_custom_call.1} parent=1 // pred_region
      %94 = vsyncadd [#allocation14], 0
      %s95 = sshll.u32 %s7, 4
      %s96 = int_to_ptr.hbm [resolvable:$true] %s95
      %s97 = sshll.u32 [#allocation13], 4
      %s98 = int_to_ptr.vmem [resolvable:$true] %s97
      %103 = dma.hbm_to_vmem [thread:$0]  %s96, 128, %s98, [#allocation14], 64, 64, 4
    $region33: #{tpu_custom_call.1} parent=1 // pred_fallthru
      _
    // Predicated region
    $region34: #{tpu_custom_call.1} parent=1 // pred_check
      _
    $region35: #{tpu_custom_call.1} parent=1 // pred_check_branch
      %105 = sbr.rel (0) target = $region37
    $region36: #{tpu_custom_call.1} parent=1 // pred_region
      _
    $region37: #{tpu_custom_call.1} parent=1 // pred_fallthru
      _
    // Predicated region
    $region38: #{tpu_custom_call.1} parent=1 // pred_check
      _
    $region39: #{tpu_custom_call.1} parent=1 // pred_check_branch
      %107 = sbr.rel (0) target = $region41
    $region40: #{tpu_custom_call.1} parent=1 // pred_region
      %109 = dma.done [#allocation5], 128
    $region41: #{tpu_custom_call.1} parent=1 // pred_fallthru
      _
    // Predicated region
    $region42: #{tpu_custom_call.1} parent=1 // pred_check
      _
    $region43: #{tpu_custom_call.1} parent=1 // pred_check_branch
      %111 = sbr.rel (0) target = $region45
    $region44: #{tpu_custom_call.1} parent=1 // pred_region
      %113 = dma.done [#allocation8], 128
    $region45: #{tpu_custom_call.1} parent=1 // pred_fallthru
      _
    // Predicated region
    $region46: #{tpu_custom_call.1} parent=1 // pred_check
      _
    $region47: #{tpu_custom_call.1} parent=1 // pred_check_branch
      %115 = sbr.rel (0) target = $region49
    $region48: #{tpu_custom_call.1} parent=1 // pred_region
      %117 = dma.done [#allocation8], 128
    $region49: #{tpu_custom_call.1} parent=1 // pred_fallthru
      _
    // Predicated region
    $region50: #{tpu_custom_call.1} parent=1 // pred_check
      _
    $region51: #{tpu_custom_call.1} parent=1 // pred_check_branch
      %119 = sbr.rel (0) target = $region53
    $region52: #{tpu_custom_call.1} parent=1 // pred_region
      %121 = dma.done [#allocation11], 128
    $region53: #{tpu_custom_call.1} parent=1 // pred_fallthru
      _
    // Predicated region
    $region54: #{tpu_custom_call.1} parent=1 // pred_check
      _
    $region55: #{tpu_custom_call.1} parent=1 // pred_check_branch
      %123 = sbr.rel (0) target = $region57
    $region56: #{tpu_custom_call.1} parent=1 // pred_region
      %125 = dma.done [#allocation11], 128
    $region57: #{tpu_custom_call.1} parent=1 // pred_fallthru
      _
    // Predicated region
    $region58: #{tpu_custom_call.1} parent=1 // pred_check
      _
    $region59: #{tpu_custom_call.1} parent=1 // pred_check_branch
      %127 = sbr.rel (0) target = $region61
    $region60: #{tpu_custom_call.1} parent=1 // pred_region
      %129 = dma.done [#allocation14], 128
    $region61: #{tpu_custom_call.1} parent=1 // pred_fallthru
      _
    %p131 = scmp.eq.s32.totalorder 0, 0
    // Predicated region
    $region62: #{tpu_custom_call.1} parent=1 // pred_check
      %p132 = pneg %p131
    $region63: #{tpu_custom_call.1} parent=1 // pred_check_branch
      %134 = sbr.rel (%p132) target = $region65
    $region64: #{tpu_custom_call.1} parent=1 // pred_region
      %v135 = vld [vmem:[#allocation7] sm:$0xf]
      %v136 = vld [vmem:[#allocation7 + $0x4] sm:$0xf]
      %v137 = vld [vmem:[#allocation9] sm:$0xf]
      %v138 = vld [vmem:[#allocation9 + $0x4] sm:$0xf]
      %v139 = vld [vmem:[#allocation12] sm:$0xf]
      %v140 = vld [vmem:[#allocation12 + $0x4] sm:$0xf]
      %v141 = vld [vmem:[%s6] sm:$0x1]
      %v143 = vperm.slane %v141, 0
      %v147 = vunpack.c.l.b16 %v135
      %v148 = vunpack.c.l.b16 %v136
      %v149 = vpack.c.b16 %v148, %v147
      %v152 = vunpack.c.l.b16 %v139
      %v153 = vunpack.c.l.b16 %v140
      %v154 = vpack.c.b16 %v153, %v152
      %vm156 = vcmask 130048
      %v158 = vsel %vm156, %v149, 0
      %160 = vmatpush.bf16.msra.mxu0 0
      %161 = vmatpush.bf16.msra.mxu0 0
      %162 = vmatpush.bf16.msra.mxu0 0
      %163 = vmatpush.bf16.msra.mxu0 0
      %164 = vmatpush.bf16.msra.mxu0 0
      %165 = vmatpush.bf16.msra.mxu0 0
      %166 = vmatpush.bf16.msra.mxu0 0
      %167 = vmatpush.bf16.msra.mxu0 %v154
      %168 = vmatmul.bf16.gmra.mxu0 %v158
      %v169 = vpop.f32.mrf.mxu0
      %v170 = vadd.f32 %v143, %v169
      %v171 = vpop.f32.mrf.mxu0
      %v172 = vadd.f32 %v143, %v171
      %173 = vdwg.mxu0
      %v174 = vld [vmem:[#allocation13] sm:$0xf]
      %v175 = vld [vmem:[#allocation13 + $0x4] sm:$0xf]
      %v176 = vld [vmem:[%s8] sm:$0x1]
      %v178 = vperm.slane %v176, 0
      %v182 = vunpack.c.l.b16 %v137
      %v183 = vunpack.c.l.b16 %v138
      %v184 = vpack.c.b16 %v183, %v182
      %v187 = vunpack.c.l.b16 %v174
      %v188 = vunpack.c.l.b16 %v175
      %v189 = vpack.c.b16 %v188, %v187
      %v192 = vsel %vm156, %v184, 0
      %194 = vmatpush.bf16.msra.mxu0 0
      %195 = vmatpush.bf16.msra.mxu0 0
      %196 = vmatpush.bf16.msra.mxu0 0
      %197 = vmatpush.bf16.msra.mxu0 0
      %198 = vmatpush.bf16.msra.mxu0 0
      %199 = vmatpush.bf16.msra.mxu0 0
      %200 = vmatpush.bf16.msra.mxu0 0
      %201 = vmatpush.bf16.msra.mxu0 %v189
      %202 = vmatmul.bf16.gmra.mxu0 %v192
      %v203 = vpop.f32.mrf.mxu0
      %v204 = vadd.f32 %v178, %v203
      %v205 = vpop.f32.mrf.mxu0
      %v206 = vadd.f32 %v178, %v205
      %207 = vdwg.mxu0
      %v208 = vpack.c.bf16 %v170, %v170
      %v209 = vpack.c.bf16 %v172, %v172
      %vm210 = vcmask 257024
      %211 = vst.msk [vmem:[#allocation2] sm:$0xf] %vm210, %v208
      %212 = vst.msk [vmem:[#allocation2 + $0x4] sm:$0xf] %vm210, %v209
      %v213 = vpack.c.bf16 %v204, %v204
      %v214 = vpack.c.bf16 %v206, %v206
      %215 = vst.msk [vmem:[#allocation3] sm:$0xf] %vm210, %v213
      %216 = vst.msk [vmem:[#allocation3 + $0x4] sm:$0xf] %vm210, %v214
    $region65: #{tpu_custom_call.1} parent=1 // pred_fallthru
      _
    %v217 = vld [vmem:[#allocation4] sm:$0xf]
    %v218 = vld [vmem:[#allocation4 + $0x4] sm:$0xf]
    %v219 = vld [vmem:[#allocation10] sm:$0xf]
    %v220 = vld [vmem:[#allocation10 + $0x4] sm:$0xf]
    %v221 = vld [vmem:[%s4] sm:$0x1]
    %v223 = vperm.slane %v221, 0
    %v227 = vunpack.c.l.b16 %v217
    %v228 = vunpack.c.l.b16 %v218
    %v229 = vpack.c.b16 %v228, %v227
    %v232 = vunpack.c.l.b16 %v219
    %v233 = vunpack.c.l.b16 %v220
    %v234 = vpack.c.b16 %v233, %v232
    %vm236 = vcmask 130048
    %v238 = vsel %vm236, %v229, 0
    %240 = vmatpush.bf16.msra.mxu0 0
    %241 = vmatpush.bf16.msra.mxu0 0
    %242 = vmatpush.bf16.msra.mxu0 0
    %243 = vmatpush.bf16.msra.mxu0 0
    %244 = vmatpush.bf16.msra.mxu0 0
    %245 = vmatpush.bf16.msra.mxu0 0
    %246 = vmatpush.bf16.msra.mxu0 0
    %247 = vmatpush.bf16.msra.mxu0 %v234
    %248 = vmatmul.bf16.gmra.mxu0 %v238
    %v249 = vpop.f32.mrf.mxu0
    %v250 = vadd.f32 %v223, %v249
    %v251 = vpop.f32.mrf.mxu0
    %v252 = vadd.f32 %v223, %v251
    %253 = vdwg.mxu0
    %v254 = vpack.c.bf16 %v250, %v250
    %v255 = vpack.c.bf16 %v252, %v252
    %v256 = vld [vmem:[#allocation2] sm:$0xf]
    %v257 = vld [vmem:[#allocation2 + $0x4] sm:$0xf]
    %vm258 = vcmask 261120
    %v260 = vsel %vm258, %v254, 0
    %v263 = vsel %vm258, %v256, 0
    %265 = vmatpush.bf16.xpose.msra.mxu0 0
    %266 = vmatpush.bf16.xpose.msra.mxu0 0
    %267 = vmatpush.bf16.xpose.msra.mxu0 0
    %268 = vmatpush.bf16.xpose.msra.mxu0 0
    %269 = vmatpush.bf16.xpose.msra.mxu0 0
    %270 = vmatpush.bf16.xpose.msra.mxu0 0
    %271 = vmatpush.bf16.xpose.msra.mxu0 0
    %272 = vmatpush.bf16.xpose.msra.mxu0 %v263
    %273 = vmatmul.bf16.gmra.mxu0 %v260
    %v274 = vpop.f32.mrf.mxu0
    %v275 = vadd.f32 0.0, %v274
    %v276 = vpop.f32.mrf.mxu0
    %277 = vdwg.mxu0
    %v279 = vsel %vm258, %v255, 0
    %v282 = vsel %vm258, %v257, 0
    %284 = vmatpush.bf16.xpose.msra.mxu0 0
    %285 = vmatpush.bf16.xpose.msra.mxu0 0
    %286 = vmatpush.bf16.xpose.msra.mxu0 0
    %287 = vmatpush.bf16.xpose.msra.mxu0 0
    %288 = vmatpush.bf16.xpose.msra.mxu0 0
    %289 = vmatpush.bf16.xpose.msra.mxu0 0
    %290 = vmatpush.bf16.xpose.msra.mxu0 0
    %291 = vmatpush.bf16.xpose.msra.mxu0 %v282
    %292 = vmatmul.bf16.gmra.mxu0 %v279
    %v293 = vpop.f32.mrf.mxu0
    %v294 = vadd.f32 0.0, %v293
    %v295 = vpop.f32.mrf.mxu0
    %296 = vdwg.mxu0
    %vm297 = vcmask 64512
    %v298 = vsel %vm297, %v275, -inf
    %299 = vmax.xlane.f32.xlu0 %v298
    %v300 = vpop.xlane.xlu0 %299
    %v301 = vsel %vm297, %v294, -inf
    %302 = vmax.xlane.f32.xlu0 %v301
    %v303 = vpop.xlane.xlu0 %302
    %v304 = vsub.f32 %v275, %v300
    %v305 = vsub.f32 %v294, %v303
    %v306 = vpack.c.bf16 %v304, %v304
    %v307 = vpack.c.bf16 %v305, %v305
    %v308 = vunpack.c.l.bf16 %v306
    %v309 = vunpack.c.l.bf16 %v307
    %v310 = vmul.f32 %v308, 1.442695
    %v311 = vpow.pop %v310
    %v312 = vmul.f32 %v309, 1.442695
    %v313 = vpow.pop %v312
    %v314 = vpack.c.bf16 %v311, %v311
    %v315 = vpack.c.bf16 %v313, %v313
    %v316 = vunpack.c.l.bf16 %v314
    %v317 = vunpack.c.l.bf16 %v315
    %v318 = vsel %vm297, %v316, 0.0
    %319 = vadd.xlane.f32.xlu0 %v318
    %v320 = vpop.xlane.xlu0 %319
    %v321 = vsel %vm297, %v317, 0.0
    %322 = vadd.xlane.f32.xlu0 %v321
    %v323 = vpop.xlane.xlu0 %322
    %v324 = vrcp.pop %v320
    %v325 = vrcp.pop %v323
    %v326 = vmul.f32 %v316, %v324
    %v327 = vmul.f32 %v317, %v325
    %v328 = vpack.c.bf16 %v326, %v326
    %v329 = vpack.c.bf16 %v327, %v327
    %v330 = vld [vmem:[#allocation3] sm:$0xf]
    %v331 = vld [vmem:[#allocation3 + $0x4] sm:$0xf]
    %v333 = vsel %vm297, %v328, 0
    %vm335 = vcmask 1043456
    %v337 = vsel %vm335, %v330, 0
    %339 = vmatpush.bf16.msra.mxu0 0
    %340 = vmatpush.bf16.msra.mxu0 0
    %341 = vmatpush.bf16.msra.mxu0 0
    %342 = vmatpush.bf16.msra.mxu0 0
    %343 = vmatpush.bf16.msra.mxu0 0
    %344 = vmatpush.bf16.msra.mxu0 0
    %345 = vmatpush.bf16.msra.mxu0 0
    %346 = vmatpush.bf16.msra.mxu0 %v337
    %347 = vmatmul.bf16.gmra.mxu0 %v333
    %v348 = vpop.f32.mrf.mxu0
    %v349 = vadd.f32 0.0, %v348
    %v350 = vpop.f32.mrf.mxu0
    %351 = vdwg.mxu0
    %v353 = vsel %vm297, %v329, 0
    %v356 = vsel %vm335, %v331, 0
    %358 = vmatpush.bf16.msra.mxu0 0
    %359 = vmatpush.bf16.msra.mxu0 0
    %360 = vmatpush.bf16.msra.mxu0 0
    %361 = vmatpush.bf16.msra.mxu0 0
    %362 = vmatpush.bf16.msra.mxu0 0
    %363 = vmatpush.bf16.msra.mxu0 0
    %364 = vmatpush.bf16.msra.mxu0 0
    %365 = vmatpush.bf16.msra.mxu0 %v356
    %366 = vmatmul.bf16.gmra.mxu0 %v353
    %v367 = vpop.f32.mrf.mxu0
    %v368 = vadd.f32 0.0, %v367
    %v369 = vpop.f32.mrf.mxu0
    %370 = vdwg.mxu0
    %371 = vst.msk [vmem:[#allocation15] sm:$0xff] %vm258, %v349
    %372 = vst.msk [vmem:[#allocation15 + $0x8] sm:$0xff] %vm258, %v368
    %373 = vst.msk [vmem:[#allocation16] sm:$0xff] %vm297, %v326
    %374 = vst.msk [vmem:[#allocation16 + $0x8] sm:$0xff] %vm297, %v327
    // Predicated region
    $region66: #{tpu_custom_call.1} parent=1 // pred_check
      _
    $region67: #{tpu_custom_call.1} parent=1 // pred_check_branch
      %376 = sbr.rel (0) target = $region69
    $region68: #{tpu_custom_call.1} parent=1 // pred_region
      %378 = vsyncadd [#allocation6], 0
      %s379 = sshll.u32 [#allocation15], 4
      %s380 = int_to_ptr.vmem [resolvable:$true] %s379
      %s381 = sshll.u32 %s9, 4
      %s382 = int_to_ptr.hbm [resolvable:$true] %s381
      %387 = dma.vmem_to_hbm [thread:$0]  %s380, 256, %s382, [#allocation6], 128, 128, 8
    $region69: #{tpu_custom_call.1} parent=1 // pred_fallthru
      _
    // Predicated region
    $region70: #{tpu_custom_call.1} parent=1 // pred_check
      _
    $region71: #{tpu_custom_call.1} parent=1 // pred_check_branch
      %389 = sbr.rel (0) target = $region73
    $region72: #{tpu_custom_call.1} parent=1 // pred_region
      %391 = vsyncadd [#allocation17], 0
      %s392 = sshll.u32 [#allocation16], 4
      %s393 = int_to_ptr.vmem [resolvable:$true] %s392
      %s394 = sshll.u32 %s10, 4
      %s395 = int_to_ptr.hbm [resolvable:$true] %s394
      %400 = dma.vmem_to_hbm [thread:$0]  %s393, 256, %s395, [#allocation17], 128, 128, 8
    $region73: #{tpu_custom_call.1} parent=1 // pred_fallthru
      _
    // Predicated region
    $region74: #{tpu_custom_call.1} parent=1 // pred_check
      _
    $region75: #{tpu_custom_call.1} parent=1 // pred_check_branch
      %402 = sbr.rel (0) target = $region77
    $region76: #{tpu_custom_call.1} parent=1 // pred_region
      %404 = dma.done [#allocation6], 256
    $region77: #{tpu_custom_call.1} parent=1 // pred_fallthru
      _
    // Predicated region
    $region78: #{tpu_custom_call.1} parent=1 // pred_check
      _
    $region79: #{tpu_custom_call.1} parent=1 // pred_check_branch
      %406 = sbr.rel (0) target = $region81
    $region80: #{tpu_custom_call.1} parent=1 // pred_region
      %408 = dma.done [#allocation17], 256
    $region81: #{tpu_custom_call.1} parent=1 // pred_fallthru
      _
    %409 = vsyncpa [#allocation5], 1
    %410 = vsyncpa [#allocation8], 1
    %411 = vsyncpa [#allocation11], 1
    %412 = vsyncpa [#allocation14], 1
    %413 = vsyncpa [#allocation6], 1
    %414 = vsyncpa [#allocation17], 1

</llo_original>
